<compile_context>
chip_gen: v6e
topology: v6e:2x2x1
jax: 0.10.0
libtpu: 0.0.40
codegen_flags: <defaults>
</compile_context>

<pallas_src>
import functools
import math

import jax
import jax.numpy as jnp
from jax.experimental import pallas as pl
from jax.experimental.pallas import tpu as pltpu

# ----------------------------- small config -------------------------------
D_MODEL = 32          # hidden_size
NUM_STEPS = 8         # num_static_and_temporal_steps == sequence length
D_FFN = 64            # decoder1 output dim
N_CLASS = 4
BATCH = 2
NUM_HEADS = 2         # BertConfig(num_attention_heads=2)
NUM_LAYERS = 2        # BertConfig(num_hidden_layers=2)
INTERMEDIATE = 4 * D_MODEL
LN_EPS = 1e-12        # BERT layer_norm_eps default
LANES = 128           # lane width of the parameter / output slabs
OUT_COLS = 64         # scores are padded to 64 lanes in the output slab


# ------------------------------ fused kernel -------------------------------
def _fused_forward_kernel(layout, x_ref, w_ref, out_ref):
    """Whole PatientFineTuneBERTModel forward in one kernel (all VMEM)."""
    B, S, D, H = BATCH, NUM_STEPS, D_MODEL, NUM_HEADS
    dh = D // H
    f32, bf16 = jnp.float32, jnp.bfloat16

    def ld(name):                                   # static slab sub-view (f32)
        r0, nr, nc = layout[name]
        return w_ref[r0:r0 + nr, 0:nc]

    def ldw(name):                                  # weight operand for the MXU
        return ld(name).astype(bf16)

    def mm(a, b_bf16):                              # bf16 x bf16 -> f32 matmul
        return jnp.dot(a.astype(bf16), b_bf16, preferred_element_type=f32)

    def layernorm(x, g, b):
        mean = jnp.mean(x, axis=-1, keepdims=True)
        cen = x - mean
        var = jnp.mean(cen * cen, axis=-1, keepdims=True)
        return cen * jax.lax.rsqrt(var + LN_EPS) * g + b

    def gelu(y):
        # TODO(synk): HF BERT default hidden_act="gelu" is the exact erf-GELU;
        # the tanh approximation is used here to stay on EUP-native ops.
        c = math.sqrt(2.0 / math.pi)
        return 0.5 * y * (1.0 + jnp.tanh(c * (y + 0.044715 * y * y * y)))

    # Block-diagonal additive mask (0 within an example, -1e9 across examples),
    # precomputed host-side and loaded once from the slab.
    attn_mask = ld("attn_mask")                                  # (B*S, B*S)

    # ---- BertEmbeddings: inputs_embeds + pos_emb + token_type_emb(0), LN ----
    x2d = layernorm(x_ref[...] + ld("emb_add"),
                    ld("emb_ln_g"), ld("emb_ln_b"))              # (B*S, D) f32

    # ---- 2 BertLayers (post-LN), fully unrolled at trace time ----
    for li in range(NUM_LAYERS):
        L = lambda s: "l%d_%s" % (li, s)                         # noqa: E731
        xb = x2d.astype(bf16)                                    # cast once

        # Q/K/V projections (1/sqrt(dh) already folded into wq/bq at pack time)
        q = jnp.dot(xb, ldw(L("wq")), preferred_element_type=f32) + ld(L("bq"))
        k = jnp.dot(xb, ldw(L("wk")), preferred_element_type=f32) + ld(L("bk"))
        v = jnp.dot(xb, ldw(L("wv")), preferred_element_type=f32) + ld(L("bv"))

        wo_r0, _, wo_nc = layout[L("wo")]
        attn = None
        for h in range(H):
            c0, c1 = h * dh, (h + 1) * dh
            qh = q[:, c0:c1].astype(bf16)                        # (B*S, dh)
            kh = k[:, c0:c1].astype(bf16)
            vh = v[:, c0:c1].astype(bf16)

            # one scores matmul across both batch rows + block-diagonal mask
            s = jax.lax.dot_general(
                qh, kh, (((1,), (1,)), ((), ())),
                preferred_element_type=f32) + attn_mask          # (B*S, B*S)
            s = s - jnp.max(s, axis=-1, keepdims=True)
            e = jnp.exp(s)
            prob = e * pl.reciprocal(
                jnp.sum(e, axis=-1, keepdims=True), approx=True)

            ctx = jnp.dot(prob.astype(bf16), vh,
                          preferred_element_type=f32)            # (B*S, dh)
            # head merge folded into the output projection (rows h*dh:(h+1)*dh)
            wo_h = w_ref[wo_r0 + c0:wo_r0 + c1, 0:wo_nc].astype(bf16)
            part = jnp.dot(ctx.astype(bf16), wo_h,
                           preferred_element_type=f32)           # (B*S, D)
            attn = part if attn is None else attn + part

        attn = attn + ld(L("bo"))
        x2d = layernorm(attn + x2d, ld(L("ln1_g")), ld(L("ln1_b")))

        inter = gelu(mm(x2d, ldw(L("wi"))) + ld(L("bi")))        # (B*S, 4D)
        ffn = mm(inter, ldw(L("wo2"))) + ld(L("bo2"))            # (B*S, D)
        x2d = layernorm(ffn + x2d, ld(L("ln2_g")), ld(L("ln2_b")))

    # ---- decoders on ALL rows (same MXU passes); CLS rows picked on host ----
    seq_emb = jnp.maximum(mm(x2d, ldw("dec1_w")) + ld("dec1_b"), 0.0)  # (16,64)
    logits = mm(seq_emb, ldw("dec2_w")) + ld("dec2_b")                 # (16,64)
    scores = 1.0 / (1.0 + jnp.exp(-logits))

    # single lane-dense (16, 128) output slab
    out_ref[:, 0:D_FFN] = seq_emb.astype(out_ref.dtype)
    out_ref[:, D_FFN:D_FFN + OUT_COLS] = scores.astype(out_ref.dtype)


def make_forward(layout, slab_rows):
    kernel = functools.partial(_fused_forward_kernel, layout)
    vmem = pl.BlockSpec(memory_space=pltpu.MemorySpace.VMEM)
    rows = BATCH * NUM_STEPS
    call = pl.pallas_call(
        kernel,
        out_shape=jax.ShapeDtypeStruct((rows, LANES), jnp.float32),
        in_specs=[vmem, vmem],
        out_specs=vmem,
        cost_estimate=pl.CostEstimate(
            flops=1_000_000,
            transcendentals=6_000,
            bytes_accessed=int(slab_rows * LANES * 4
                               + rows * (D_MODEL + LANES) * 4)),
    )

    def forward(patient_embeddings, slab, return_embedding=False):
        x2d = patient_embeddings.reshape(rows, D_MODEL).astype(jnp.float32)
        out = call(x2d, slab)                 # (B*S, 128)
        cls = out[::NUM_STEPS]                # rows 0, S, ... -> (B, 128)
        seq_embedding = cls[:, :D_FFN]
        scores = cls[:, D_FFN:D_FFN + N_CLASS]
        return seq_embedding if return_embedding else scores

    return forward


# --------------------------- parameter creation ----------------------------
def _init_params(key):
    keys = iter(jax.random.split(key, 128))

    def nrm(shape, std=0.02):
        return (std * jax.random.normal(next(keys), shape)).astype(jnp.float32)

    p = {
        # BertEmbeddings (inputs_embeds path: word-embedding table unused)
        "pos_emb": nrm((NUM_STEPS + 1, D_MODEL)),   # max_position_embeddings=S+1
        "tok_emb": nrm((2, D_MODEL)),               # type_vocab_size = 2
        "emb_ln_g": jnp.ones((D_MODEL,), jnp.float32),
        "emb_ln_b": jnp.zeros((D_MODEL,), jnp.float32),
        "layers": [],
    }
    for _ in range(NUM_LAYERS):
        p["layers"].append({
            "wq": nrm((D_MODEL, D_MODEL)), "bq": jnp.zeros((D_MODEL,), jnp.float32),
            "wk": nrm((D_MODEL, D_MODEL)), "bk": jnp.zeros((D_MODEL,), jnp.float32),
            "wv": nrm((D_MODEL, D_MODEL)), "bv": jnp.zeros((D_MODEL,), jnp.float32),
            "wo": nrm((D_MODEL, D_MODEL)), "bo": jnp.zeros((D_MODEL,), jnp.float32),
            "ln1_g": jnp.ones((D_MODEL,), jnp.float32),
            "ln1_b": jnp.zeros((D_MODEL,), jnp.float32),
            "wi": nrm((D_MODEL, INTERMEDIATE)),
            "bi": jnp.zeros((INTERMEDIATE,), jnp.float32),
            "wo2": nrm((INTERMEDIATE, D_MODEL)),
            "bo2": jnp.zeros((D_MODEL,), jnp.float32),
            "ln2_g": jnp.ones((D_MODEL,), jnp.float32),
            "ln2_b": jnp.zeros((D_MODEL,), jnp.float32),
        })

    # decoder1 / decoder2: xavier_normal_ weights, zero biases (as in __init__).
    std1 = math.sqrt(2.0 / (D_MODEL + D_FFN))
    std2 = math.sqrt(2.0 / (D_FFN + N_CLASS))
    p["dec1_w"] = nrm((D_MODEL, D_FFN), std=std1)
    p["dec1_b"] = jnp.zeros((D_FFN,), jnp.float32)
    p["dec2_w"] = nrm((D_FFN, N_CLASS), std=std2)
    p["dec2_b"] = jnp.zeros((N_CLASS,), jnp.float32)
    return p


def _pack_params(p):
    """Pack every parameter into ONE lane-dense (rows, 128) f32 slab.

    Returns (slab, layout) where layout[name] = (row_start, n_rows, n_cols)
    with every row_start aligned to the 8-row sublane tile.
    """
    entries = []

    def add(name, arr):
        arr = jnp.asarray(arr, jnp.float32)
        if arr.ndim == 1:
            arr = arr.reshape(1, -1)
        entries.append((name, arr))

    # Embedding contribution precomputed for position_ids 0..S-1 and
    # token_type_id 0 (the HF defaults for the inputs_embeds path),
    # broadcast to (B*S, D).
    emb_add = jnp.tile(p["pos_emb"][:NUM_STEPS] + p["tok_emb"][0][None, :],
                       (BATCH, 1))
    add("emb_add", emb_add)
    add("emb_ln_g", p["emb_ln_g"])
    add("emb_ln_b", p["emb_ln_b"])

    # Block-diagonal attention mask over the (B*S, B*S) joint scores matrix.
    row_b = jnp.arange(BATCH * NUM_STEPS) // NUM_STEPS
    mask = jnp.where(row_b[:, None] == row_b[None, :], 0.0, -1e9)
    add("attn_mask", mask.astype(jnp.float32))

    scale = 1.0 / math.sqrt(D_MODEL // NUM_HEADS)
    for li, lp in enumerate(p["layers"]):
        pre = "l%d_" % li
        add(pre + "wq", lp["wq"] * scale)   # fold 1/sqrt(dh) into Q projection
        add(pre + "bq", lp["bq"] * scale)
        add(pre + "wk", lp["wk"]); add(pre + "bk", lp["bk"])
        add(pre + "wv", lp["wv"]); add(pre + "bv", lp["bv"])
        add(pre + "wo", lp["wo"]); add(pre + "bo", lp["bo"])
        add(pre + "ln1_g", lp["ln1_g"]); add(pre + "ln1_b", lp["ln1_b"])
        add(pre + "wi", lp["wi"]); add(pre + "bi", lp["bi"])
        add(pre + "wo2", lp["wo2"]); add(pre + "bo2", lp["bo2"])
        add(pre + "ln2_g", lp["ln2_g"]); add(pre + "ln2_b", lp["ln2_b"])

    add("dec1_w", p["dec1_w"]); add("dec1_b", p["dec1_b"])
    # pad decoder2 to 64 output lanes so both results fill one output slab
    dec2_w_pad = jnp.zeros((D_FFN, OUT_COLS), jnp.float32)
    dec2_w_pad = dec2_w_pad.at[:, :N_CLASS].set(p["dec2_w"])
    dec2_b_pad = jnp.zeros((OUT_COLS,), jnp.float32).at[:N_CLASS].set(p["dec2_b"])
    add("dec2_w", dec2_w_pad); add("dec2_b", dec2_b_pad)

    layout = {}
    cursor = 0
    for name, arr in entries:
        nr, nc = arr.shape
        start = ((cursor + 7) // 8) * 8       # sublane-tile aligned
        layout[name] = (start, nr, nc)
        cursor = start + nr
    total_rows = ((cursor + 7) // 8) * 8

    slab = jnp.zeros((total_rows, LANES), jnp.float32)
    for name, arr in entries:
        r0, nr, nc = layout[name]
        slab = slab.at[r0:r0 + nr, :nc].set(arr)
    return slab, layout


# ----------------------------------- main -----------------------------------
if __name__ == "__main__":
    root = jax.random.PRNGKey(0)
    pkey, xkey = jax.random.split(root)

    params = _init_params(pkey)
    slab, layout = _pack_params(params)
    forward = make_forward(layout, slab.shape[0])

    # module input is reshaped to (batch, num_steps, d_model) inside forward,
    # so we feed it flattened per example: (BATCH, NUM_STEPS * D_MODEL)
    x = jax.random.normal(xkey, (BATCH, NUM_STEPS * D_MODEL), dtype=jnp.float32)

    fwd = jax.jit(lambda xx, w: forward(xx, w))
    scores = fwd(x, slab)
    jax.block_until_ready(scores)

    assert scores.shape == (BATCH, N_CLASS)
    assert bool(jnp.all(jnp.isfinite(scores)))
    assert bool(jnp.all((scores >= 0.0) & (scores <= 1.0)))  # sigmoid output
    print("KERNEL_OK")
</pallas_src>

<mosaic_0001>
module attributes {stable_mosaic.version = 11 : i64} {
  func.func @_fused_forward_kernel(%arg0: memref<16x32xf32, #tpu.memory_space<vmem>>, %arg1: memref<896x128xf32, #tpu.memory_space<vmem>>, %arg2: memref<16x128xf32, #tpu.memory_space<vmem>>) attributes {dimension_semantics = [], scalar_prefetch = 0 : i64, scratch_operands = 0 : i64, tpu.core_type = #tpu.core_type<tc>} {
    %c32 = arith.constant 32 : index
    %c0 = arith.constant 0 : index
    %0 = vector.load %arg1[%c32, %c0] : memref<896x128xf32, #tpu.memory_space<vmem>>, vector<16x16xf32>
    %c0_0 = arith.constant 0 : index
    %c0_1 = arith.constant 0 : index
    %1 = vector.load %arg0[%c0_0, %c0_1] : memref<16x32xf32, #tpu.memory_space<vmem>>, vector<16x32xf32>
    %c0_2 = arith.constant 0 : index
    %c0_3 = arith.constant 0 : index
    %2 = vector.load %arg1[%c0_2, %c0_3] : memref<896x128xf32, #tpu.memory_space<vmem>>, vector<16x32xf32>
    %3 = arith.addf %1, %2 : vector<16x32xf32>
    %c16 = arith.constant 16 : index
    %c0_4 = arith.constant 0 : index
    %4 = vector.load %arg1[%c16, %c0_4] : memref<896x128xf32, #tpu.memory_space<vmem>>, vector<1x32xf32>
    %c24 = arith.constant 24 : index
    %c0_5 = arith.constant 0 : index
    %5 = vector.load %arg1[%c24, %c0_5] : memref<896x128xf32, #tpu.memory_space<vmem>>, vector<1x32xf32>
    %cst = arith.constant dense<0.000000e+00> : vector<16xf32>
    %6 = vector.multi_reduction <add>, %3, %cst [1] : vector<16x32xf32> to vector<16xf32>
    %7 = vector.shape_cast %6 : vector<16xf32> to vector<16x1xf32>
    %cst_6 = arith.constant 3.200000e+01 : f32
    %8 = vector.broadcast %cst_6 : f32 to vector<16x1xf32>
    %9 = arith.divf %7, %8 : vector<16x1xf32>
    %10 = vector.broadcast %9 : vector<16x1xf32> to vector<16x32xf32>
    %11 = arith.subf %3, %10 : vector<16x32xf32>
    %12 = arith.mulf %11, %11 : vector<16x32xf32>
    %cst_7 = arith.constant dense<0.000000e+00> : vector<16xf32>
    %13 = vector.multi_reduction <add>, %12, %cst_7 [1] : vector<16x32xf32> to vector<16xf32>
    %14 = vector.shape_cast %13 : vector<16xf32> to vector<16x1xf32>
    %cst_8 = arith.constant 3.200000e+01 : f32
    %15 = vector.broadcast %cst_8 : f32 to vector<16x1xf32>
    %16 = arith.divf %14, %15 : vector<16x1xf32>
    %cst_9 = arith.constant 9.99999996E-13 : f32
    %17 = vector.broadcast %cst_9 : f32 to vector<16x1xf32>
    %18 = arith.addf %16, %17 : vector<16x1xf32>
    %19 = math.rsqrt %18 : vector<16x1xf32>
    %20 = vector.broadcast %19 : vector<16x1xf32> to vector<16x32xf32>
    %21 = arith.mulf %11, %20 : vector<16x32xf32>
    %22 = vector.broadcast %4 : vector<1x32xf32> to vector<16x32xf32>
    %23 = arith.mulf %21, %22 : vector<16x32xf32>
    %24 = vector.broadcast %5 : vector<1x32xf32> to vector<16x32xf32>
    %25 = arith.addf %23, %24 : vector<16x32xf32>
    %26 = arith.truncf %25 : vector<16x32xf32> to vector<16x32xbf16>
    %c48 = arith.constant 48 : index
    %c0_10 = arith.constant 0 : index
    %27 = vector.load %arg1[%c48, %c0_10] : memref<896x128xf32, #tpu.memory_space<vmem>>, vector<32x32xf32>
    %28 = arith.truncf %27 : vector<32x32xf32> to vector<32x32xbf16>
    %cst_11 = arith.constant dense<0.000000e+00> : vector<16x32xf32>
    %29 = tpu.matmul %26, %28, %cst_11 {dimension_numbers = #tpu.dot_dimension_numbers<[1], [0], [0], [1], [0, 0, 1, 1], [], []>} : vector<16x32xbf16>, vector<32x32xbf16>, vector<16x32xf32> -> vector<16x32xf32>
    %c80 = arith.constant 80 : index
    %c0_12 = arith.constant 0 : index
    %30 = vector.load %arg1[%c80, %c0_12] : memref<896x128xf32, #tpu.memory_space<vmem>>, vector<1x32xf32>
    %31 = vector.broadcast %30 : vector<1x32xf32> to vector<16x32xf32>
    %32 = arith.addf %29, %31 : vector<16x32xf32>
    %c88 = arith.constant 88 : index
    %c0_13 = arith.constant 0 : index
    %33 = vector.load %arg1[%c88, %c0_13] : memref<896x128xf32, #tpu.memory_space<vmem>>, vector<32x32xf32>
    %34 = arith.truncf %33 : vector<32x32xf32> to vector<32x32xbf16>
    %cst_14 = arith.constant dense<0.000000e+00> : vector<16x32xf32>
    %35 = tpu.matmul %26, %34, %cst_14 {dimension_numbers = #tpu.dot_dimension_numbers<[1], [0], [0], [1], [0, 0, 1, 1], [], []>} : vector<16x32xbf16>, vector<32x32xbf16>, vector<16x32xf32> -> vector<16x32xf32>
    %c120 = arith.constant 120 : index
    %c0_15 = arith.constant 0 : index
    %36 = vector.load %arg1[%c120, %c0_15] : memref<896x128xf32, #tpu.memory_space<vmem>>, vector<1x32xf32>
    %37 = vector.broadcast %36 : vector<1x32xf32> to vector<16x32xf32>
    %38 = arith.addf %35, %37 : vector<16x32xf32>
    %c128 = arith.constant 128 : index
    %c0_16 = arith.constant 0 : index
    %39 = vector.load %arg1[%c128, %c0_16] : memref<896x128xf32, #tpu.memory_space<vmem>>, vector<32x32xf32>
    %40 = arith.truncf %39 : vector<32x32xf32> to vector<32x32xbf16>
    %cst_17 = arith.constant dense<0.000000e+00> : vector<16x32xf32>
    %41 = tpu.matmul %26, %40, %cst_17 {dimension_numbers = #tpu.dot_dimension_numbers<[1], [0], [0], [1], [0, 0, 1, 1], [], []>} : vector<16x32xbf16>, vector<32x32xbf16>, vector<16x32xf32> -> vector<16x32xf32>
    %c160 = arith.constant 160 : index
    %c0_18 = arith.constant 0 : index
    %42 = vector.load %arg1[%c160, %c0_18] : memref<896x128xf32, #tpu.memory_space<vmem>>, vector<1x32xf32>
    %43 = vector.broadcast %42 : vector<1x32xf32> to vector<16x32xf32>
    %44 = arith.addf %41, %43 : vector<16x32xf32>
    %45 = vector.extract_strided_slice %32 {offsets = [0, 0], sizes = [16, 16], strides = [1, 1]} : vector<16x32xf32> to vector<16x16xf32>
    %46 = arith.truncf %45 : vector<16x16xf32> to vector<16x16xbf16>
    %47 = vector.extract_strided_slice %38 {offsets = [0, 0], sizes = [16, 16], strides = [1, 1]} : vector<16x32xf32> to vector<16x16xf32>
    %48 = arith.truncf %47 : vector<16x16xf32> to vector<16x16xbf16>
    %49 = vector.extract_strided_slice %44 {offsets = [0, 0], sizes = [16, 16], strides = [1, 1]} : vector<16x32xf32> to vector<16x16xf32>
    %50 = arith.truncf %49 : vector<16x16xf32> to vector<16x16xbf16>
    %cst_19 = arith.constant dense<0.000000e+00> : vector<16x16xf32>
    %51 = tpu.matmul %46, %48, %cst_19 {dimension_numbers = #tpu.dot_dimension_numbers<[1], [1], [0], [0], [0, 0, 1, 0], [], []>} : vector<16x16xbf16>, vector<16x16xbf16>, vector<16x16xf32> -> vector<16x16xf32>
    %52 = arith.addf %51, %0 : vector<16x16xf32>
    %cst_20 = arith.constant dense<0xFF800000> : vector<16xf32>
    %53 = vector.multi_reduction <maximumf>, %52, %cst_20 [1] : vector<16x16xf32> to vector<16xf32>
    %54 = vector.shape_cast %53 : vector<16xf32> to vector<16x1xf32>
    %55 = vector.broadcast %54 : vector<16x1xf32> to vector<16x16xf32>
    %56 = arith.subf %52, %55 : vector<16x16xf32>
    %57 = math.exp %56 : vector<16x16xf32>
    %cst_21 = arith.constant dense<0.000000e+00> : vector<16xf32>
    %58 = vector.multi_reduction <add>, %57, %cst_21 [1] : vector<16x16xf32> to vector<16xf32>
    %59 = vector.shape_cast %58 : vector<16xf32> to vector<16x1xf32>
    %60 = tpu.reciprocal %59 {approx = true} : vector<16x1xf32> -> vector<16x1xf32>
    %61 = vector.broadcast %60 : vector<16x1xf32> to vector<16x16xf32>
    %62 = arith.mulf %57, %61 : vector<16x16xf32>
    %63 = arith.truncf %62 : vector<16x16xf32> to vector<16x16xbf16>
    %cst_22 = arith.constant dense<0.000000e+00> : vector<16x16xf32>
    %64 = tpu.matmul %63, %50, %cst_22 {dimension_numbers = #tpu.dot_dimension_numbers<[1], [0], [0], [1], [0, 0, 1, 1], [], []>} : vector<16x16xbf16>, vector<16x16xbf16>, vector<16x16xf32> -> vector<16x16xf32>
    %c168 = arith.constant 168 : index
    %c0_23 = arith.constant 0 : index
    %65 = vector.load %arg1[%c168, %c0_23] : memref<896x128xf32, #tpu.memory_space<vmem>>, vector<16x32xf32>
    %66 = arith.truncf %65 : vector<16x32xf32> to vector<16x32xbf16>
    %67 = arith.truncf %64 : vector<16x16xf32> to vector<16x16xbf16>
    %cst_24 = arith.constant dense<0.000000e+00> : vector<16x32xf32>
    %68 = tpu.matmul %67, %66, %cst_24 {dimension_numbers = #tpu.dot_dimension_numbers<[1], [0], [0], [1], [0, 0, 1, 1], [], []>} : vector<16x16xbf16>, vector<16x32xbf16>, vector<16x32xf32> -> vector<16x32xf32>
    %69 = vector.extract_strided_slice %32 {offsets = [0, 16], sizes = [16, 16], strides = [1, 1]} : vector<16x32xf32> to vector<16x16xf32>
    %70 = arith.truncf %69 : vector<16x16xf32> to vector<16x16xbf16>
    %71 = vector.extract_strided_slice %38 {offsets = [0, 16], sizes = [16, 16], strides = [1, 1]} : vector<16x32xf32> to vector<16x16xf32>
    %72 = arith.truncf %71 : vector<16x16xf32> to vector<16x16xbf16>
    %73 = vector.extract_strided_slice %44 {offsets = [0, 16], sizes = [16, 16], strides = [1, 1]} : vector<16x32xf32> to vector<16x16xf32>
    %74 = arith.truncf %73 : vector<16x16xf32> to vector<16x16xbf16>
    %cst_25 = arith.constant dense<0.000000e+00> : vector<16x16xf32>
    %75 = tpu.matmul %70, %72, %cst_25 {dimension_numbers = #tpu.dot_dimension_numbers<[1], [1], [0], [0], [0, 0, 1, 0], [], []>} : vector<16x16xbf16>, vector<16x16xbf16>, vector<16x16xf32> -> vector<16x16xf32>
    %76 = arith.addf %75, %0 : vector<16x16xf32>
    %cst_26 = arith.constant dense<0xFF800000> : vector<16xf32>
    %77 = vector.multi_reduction <maximumf>, %76, %cst_26 [1] : vector<16x16xf32> to vector<16xf32>
    %78 = vector.shape_cast %77 : vector<16xf32> to vector<16x1xf32>
    %79 = vector.broadcast %78 : vector<16x1xf32> to vector<16x16xf32>
    %80 = arith.subf %76, %79 : vector<16x16xf32>
    %81 = math.exp %80 : vector<16x16xf32>
    %cst_27 = arith.constant dense<0.000000e+00> : vector<16xf32>
    %82 = vector.multi_reduction <add>, %81, %cst_27 [1] : vector<16x16xf32> to vector<16xf32>
    %83 = vector.shape_cast %82 : vector<16xf32> to vector<16x1xf32>
    %84 = tpu.reciprocal %83 {approx = true} : vector<16x1xf32> -> vector<16x1xf32>
    %85 = vector.broadcast %84 : vector<16x1xf32> to vector<16x16xf32>
    %86 = arith.mulf %81, %85 : vector<16x16xf32>
    %87 = arith.truncf %86 : vector<16x16xf32> to vector<16x16xbf16>
    %cst_28 = arith.constant dense<0.000000e+00> : vector<16x16xf32>
    %88 = tpu.matmul %87, %74, %cst_28 {dimension_numbers = #tpu.dot_dimension_numbers<[1], [0], [0], [1], [0, 0, 1, 1], [], []>} : vector<16x16xbf16>, vector<16x16xbf16>, vector<16x16xf32> -> vector<16x16xf32>
    %c184 = arith.constant 184 : index
    %c0_29 = arith.constant 0 : index
    %89 = vector.load %arg1[%c184, %c0_29] : memref<896x128xf32, #tpu.memory_space<vmem>>, vector<16x32xf32>
    %90 = arith.truncf %89 : vector<16x32xf32> to vector<16x32xbf16>
    %91 = arith.truncf %88 : vector<16x16xf32> to vector<16x16xbf16>
    %cst_30 = arith.constant dense<0.000000e+00> : vector<16x32xf32>
    %92 = tpu.matmul %91, %90, %cst_30 {dimension_numbers = #tpu.dot_dimension_numbers<[1], [0], [0], [1], [0, 0, 1, 1], [], []>} : vector<16x16xbf16>, vector<16x32xbf16>, vector<16x32xf32> -> vector<16x32xf32>
    %93 = arith.addf %68, %92 : vector<16x32xf32>
    %c200 = arith.constant 200 : index
    %c0_31 = arith.constant 0 : index
    %94 = vector.load %arg1[%c200, %c0_31] : memref<896x128xf32, #tpu.memory_space<vmem>>, vector<1x32xf32>
    %95 = vector.broadcast %94 : vector<1x32xf32> to vector<16x32xf32>
    %96 = arith.addf %93, %95 : vector<16x32xf32>
    %97 = arith.addf %96, %25 : vector<16x32xf32>
    %c208 = arith.constant 208 : index
    %c0_32 = arith.constant 0 : index
    %98 = vector.load %arg1[%c208, %c0_32] : memref<896x128xf32, #tpu.memory_space<vmem>>, vector<1x32xf32>
    %c216 = arith.constant 216 : index
    %c0_33 = arith.constant 0 : index
    %99 = vector.load %arg1[%c216, %c0_33] : memref<896x128xf32, #tpu.memory_space<vmem>>, vector<1x32xf32>
    %cst_34 = arith.constant dense<0.000000e+00> : vector<16xf32>
    %100 = vector.multi_reduction <add>, %97, %cst_34 [1] : vector<16x32xf32> to vector<16xf32>
    %101 = vector.shape_cast %100 : vector<16xf32> to vector<16x1xf32>
    %cst_35 = arith.constant 3.200000e+01 : f32
    %102 = vector.broadcast %cst_35 : f32 to vector<16x1xf32>
    %103 = arith.divf %101, %102 : vector<16x1xf32>
    %104 = vector.broadcast %103 : vector<16x1xf32> to vector<16x32xf32>
    %105 = arith.subf %97, %104 : vector<16x32xf32>
    %106 = arith.mulf %105, %105 : vector<16x32xf32>
    %cst_36 = arith.constant dense<0.000000e+00> : vector<16xf32>
    %107 = vector.multi_reduction <add>, %106, %cst_36 [1] : vector<16x32xf32> to vector<16xf32>
    %108 = vector.shape_cast %107 : vector<16xf32> to vector<16x1xf32>
    %cst_37 = arith.constant 3.200000e+01 : f32
    %109 = vector.broadcast %cst_37 : f32 to vector<16x1xf32>
    %110 = arith.divf %108, %109 : vector<16x1xf32>
    %cst_38 = arith.constant 9.99999996E-13 : f32
    %111 = vector.broadcast %cst_38 : f32 to vector<16x1xf32>
    %112 = arith.addf %110, %111 : vector<16x1xf32>
    %113 = math.rsqrt %112 : vector<16x1xf32>
    %114 = vector.broadcast %113 : vector<16x1xf32> to vector<16x32xf32>
    %115 = arith.mulf %105, %114 : vector<16x32xf32>
    %116 = vector.broadcast %98 : vector<1x32xf32> to vector<16x32xf32>
    %117 = arith.mulf %115, %116 : vector<16x32xf32>
    %118 = vector.broadcast %99 : vector<1x32xf32> to vector<16x32xf32>
    %119 = arith.addf %117, %118 : vector<16x32xf32>
    %c224 = arith.constant 224 : index
    %c0_39 = arith.constant 0 : index
    %120 = vector.load %arg1[%c224, %c0_39] : memref<896x128xf32, #tpu.memory_space<vmem>>, vector<32x128xf32>
    %121 = arith.truncf %120 : vector<32x128xf32> to vector<32x128xbf16>
    %122 = arith.truncf %119 : vector<16x32xf32> to vector<16x32xbf16>
    %cst_40 = arith.constant dense<0.000000e+00> : vector<16x128xf32>
    %123 = tpu.matmul %122, %121, %cst_40 {dimension_numbers = #tpu.dot_dimension_numbers<[1], [0], [0], [1], [0, 0, 1, 1], [], []>} : vector<16x32xbf16>, vector<32x128xbf16>, vector<16x128xf32> -> vector<16x128xf32>
    %c256 = arith.constant 256 : index
    %c0_41 = arith.constant 0 : index
    %124 = vector.load %arg1[%c256, %c0_41] : memref<896x128xf32, #tpu.memory_space<vmem>>, vector<1x128xf32>
    %125 = vector.broadcast %124 : vector<1x128xf32> to vector<16x128xf32>
    %126 = arith.addf %123, %125 : vector<16x128xf32>
    %cst_42 = arith.constant 5.000000e-01 : f32
    %127 = vector.broadcast %cst_42 : f32 to vector<16x128xf32>
    %128 = arith.mulf %127, %126 : vector<16x128xf32>
    %cst_43 = arith.constant 4.471500e-02 : f32
    %129 = vector.broadcast %cst_43 : f32 to vector<16x128xf32>
    %130 = arith.mulf %129, %126 : vector<16x128xf32>
    %131 = arith.mulf %130, %126 : vector<16x128xf32>
    %132 = arith.mulf %131, %126 : vector<16x128xf32>
    %133 = arith.addf %126, %132 : vector<16x128xf32>
    %cst_44 = arith.constant 0.797884583 : f32
    %134 = vector.broadcast %cst_44 : f32 to vector<16x128xf32>
    %135 = arith.mulf %134, %133 : vector<16x128xf32>
    %136 = math.tanh %135 : vector<16x128xf32>
    %cst_45 = arith.constant 1.000000e+00 : f32
    %137 = vector.broadcast %cst_45 : f32 to vector<16x128xf32>
    %138 = arith.addf %137, %136 : vector<16x128xf32>
    %139 = arith.mulf %128, %138 : vector<16x128xf32>
    %c264 = arith.constant 264 : index
    %c0_46 = arith.constant 0 : index
    %140 = vector.load %arg1[%c264, %c0_46] : memref<896x128xf32, #tpu.memory_space<vmem>>, vector<128x32xf32>
    %141 = arith.truncf %140 : vector<128x32xf32> to vector<128x32xbf16>
    %142 = arith.truncf %139 : vector<16x128xf32> to vector<16x128xbf16>
    %cst_47 = arith.constant dense<0.000000e+00> : vector<16x32xf32>
    %143 = tpu.matmul %142, %141, %cst_47 {dimension_numbers = #tpu.dot_dimension_numbers<[1], [0], [0], [1], [0, 0, 1, 1], [], []>} : vector<16x128xbf16>, vector<128x32xbf16>, vector<16x32xf32> -> vector<16x32xf32>
    %c392 = arith.constant 392 : index
    %c0_48 = arith.constant 0 : index
    %144 = vector.load %arg1[%c392, %c0_48] : memref<896x128xf32, #tpu.memory_space<vmem>>, vector<1x32xf32>
    %145 = vector.broadcast %144 : vector<1x32xf32> to vector<16x32xf32>
    %146 = arith.addf %143, %145 : vector<16x32xf32>
    %147 = arith.addf %146, %119 : vector<16x32xf32>
    %c400 = arith.constant 400 : index
    %c0_49 = arith.constant 0 : index
    %148 = vector.load %arg1[%c400, %c0_49] : memref<896x128xf32, #tpu.memory_space<vmem>>, vector<1x32xf32>
    %c408 = arith.constant 408 : index
    %c0_50 = arith.constant 0 : index
    %149 = vector.load %arg1[%c408, %c0_50] : memref<896x128xf32, #tpu.memory_space<vmem>>, vector<1x32xf32>
    %cst_51 = arith.constant dense<0.000000e+00> : vector<16xf32>
    %150 = vector.multi_reduction <add>, %147, %cst_51 [1] : vector<16x32xf32> to vector<16xf32>
    %151 = vector.shape_cast %150 : vector<16xf32> to vector<16x1xf32>
    %cst_52 = arith.constant 3.200000e+01 : f32
    %152 = vector.broadcast %cst_52 : f32 to vector<16x1xf32>
    %153 = arith.divf %151, %152 : vector<16x1xf32>
    %154 = vector.broadcast %153 : vector<16x1xf32> to vector<16x32xf32>
    %155 = arith.subf %147, %154 : vector<16x32xf32>
    %156 = arith.mulf %155, %155 : vector<16x32xf32>
    %cst_53 = arith.constant dense<0.000000e+00> : vector<16xf32>
    %157 = vector.multi_reduction <add>, %156, %cst_53 [1] : vector<16x32xf32> to vector<16xf32>
    %158 = vector.shape_cast %157 : vector<16xf32> to vector<16x1xf32>
    %cst_54 = arith.constant 3.200000e+01 : f32
    %159 = vector.broadcast %cst_54 : f32 to vector<16x1xf32>
    %160 = arith.divf %158, %159 : vector<16x1xf32>
    %cst_55 = arith.constant 9.99999996E-13 : f32
    %161 = vector.broadcast %cst_55 : f32 to vector<16x1xf32>
    %162 = arith.addf %160, %161 : vector<16x1xf32>
    %163 = math.rsqrt %162 : vector<16x1xf32>
    %164 = vector.broadcast %163 : vector<16x1xf32> to vector<16x32xf32>
    %165 = arith.mulf %155, %164 : vector<16x32xf32>
    %166 = vector.broadcast %148 : vector<1x32xf32> to vector<16x32xf32>
    %167 = arith.mulf %165, %166 : vector<16x32xf32>
    %168 = vector.broadcast %149 : vector<1x32xf32> to vector<16x32xf32>
    %169 = arith.addf %167, %168 : vector<16x32xf32>
    %170 = arith.truncf %169 : vector<16x32xf32> to vector<16x32xbf16>
    %c416 = arith.constant 416 : index
    %c0_56 = arith.constant 0 : index
    %171 = vector.load %arg1[%c416, %c0_56] : memref<896x128xf32, #tpu.memory_space<vmem>>, vector<32x32xf32>
    %172 = arith.truncf %171 : vector<32x32xf32> to vector<32x32xbf16>
    %cst_57 = arith.constant dense<0.000000e+00> : vector<16x32xf32>
    %173 = tpu.matmul %170, %172, %cst_57 {dimension_numbers = #tpu.dot_dimension_numbers<[1], [0], [0], [1], [0, 0, 1, 1], [], []>} : vector<16x32xbf16>, vector<32x32xbf16>, vector<16x32xf32> -> vector<16x32xf32>
    %c448 = arith.constant 448 : index
    %c0_58 = arith.constant 0 : index
    %174 = vector.load %arg1[%c448, %c0_58] : memref<896x128xf32, #tpu.memory_space<vmem>>, vector<1x32xf32>
    %175 = vector.broadcast %174 : vector<1x32xf32> to vector<16x32xf32>
    %176 = arith.addf %173, %175 : vector<16x32xf32>
    %c456 = arith.constant 456 : index
    %c0_59 = arith.constant 0 : index
    %177 = vector.load %arg1[%c456, %c0_59] : memref<896x128xf32, #tpu.memory_space<vmem>>, vector<32x32xf32>
    %178 = arith.truncf %177 : vector<32x32xf32> to vector<32x32xbf16>
    %cst_60 = arith.constant dense<0.000000e+00> : vector<16x32xf32>
    %179 = tpu.matmul %170, %178, %cst_60 {dimension_numbers = #tpu.dot_dimension_numbers<[1], [0], [0], [1], [0, 0, 1, 1], [], []>} : vector<16x32xbf16>, vector<32x32xbf16>, vector<16x32xf32> -> vector<16x32xf32>
    %c488 = arith.constant 488 : index
    %c0_61 = arith.constant 0 : index
    %180 = vector.load %arg1[%c488, %c0_61] : memref<896x128xf32, #tpu.memory_space<vmem>>, vector<1x32xf32>
    %181 = vector.broadcast %180 : vector<1x32xf32> to vector<16x32xf32>
    %182 = arith.addf %179, %181 : vector<16x32xf32>
    %c496 = arith.constant 496 : index
    %c0_62 = arith.constant 0 : index
    %183 = vector.load %arg1[%c496, %c0_62] : memref<896x128xf32, #tpu.memory_space<vmem>>, vector<32x32xf32>
    %184 = arith.truncf %183 : vector<32x32xf32> to vector<32x32xbf16>
    %cst_63 = arith.constant dense<0.000000e+00> : vector<16x32xf32>
    %185 = tpu.matmul %170, %184, %cst_63 {dimension_numbers = #tpu.dot_dimension_numbers<[1], [0], [0], [1], [0, 0, 1, 1], [], []>} : vector<16x32xbf16>, vector<32x32xbf16>, vector<16x32xf32> -> vector<16x32xf32>
    %c528 = arith.constant 528 : index
    %c0_64 = arith.constant 0 : index
    %186 = vector.load %arg1[%c528, %c0_64] : memref<896x128xf32, #tpu.memory_space<vmem>>, vector<1x32xf32>
    %187 = vector.broadcast %186 : vector<1x32xf32> to vector<16x32xf32>
    %188 = arith.addf %185, %187 : vector<16x32xf32>
    %189 = vector.extract_strided_slice %176 {offsets = [0, 0], sizes = [16, 16], strides = [1, 1]} : vector<16x32xf32> to vector<16x16xf32>
    %190 = arith.truncf %189 : vector<16x16xf32> to vector<16x16xbf16>
    %191 = vector.extract_strided_slice %182 {offsets = [0, 0], sizes = [16, 16], strides = [1, 1]} : vector<16x32xf32> to vector<16x16xf32>
    %192 = arith.truncf %191 : vector<16x16xf32> to vector<16x16xbf16>
    %193 = vector.extract_strided_slice %188 {offsets = [0, 0], sizes = [16, 16], strides = [1, 1]} : vector<16x32xf32> to vector<16x16xf32>
    %194 = arith.truncf %193 : vector<16x16xf32> to vector<16x16xbf16>
    %cst_65 = arith.constant dense<0.000000e+00> : vector<16x16xf32>
    %195 = tpu.matmul %190, %192, %cst_65 {dimension_numbers = #tpu.dot_dimension_numbers<[1], [1], [0], [0], [0, 0, 1, 0], [], []>} : vector<16x16xbf16>, vector<16x16xbf16>, vector<16x16xf32> -> vector<16x16xf32>
    %196 = arith.addf %195, %0 : vector<16x16xf32>
    %cst_66 = arith.constant dense<0xFF800000> : vector<16xf32>
    %197 = vector.multi_reduction <maximumf>, %196, %cst_66 [1] : vector<16x16xf32> to vector<16xf32>
    %198 = vector.shape_cast %197 : vector<16xf32> to vector<16x1xf32>
    %199 = vector.broadcast %198 : vector<16x1xf32> to vector<16x16xf32>
    %200 = arith.subf %196, %199 : vector<16x16xf32>
    %201 = math.exp %200 : vector<16x16xf32>
    %cst_67 = arith.constant dense<0.000000e+00> : vector<16xf32>
    %202 = vector.multi_reduction <add>, %201, %cst_67 [1] : vector<16x16xf32> to vector<16xf32>
    %203 = vector.shape_cast %202 : vector<16xf32> to vector<16x1xf32>
    %204 = tpu.reciprocal %203 {approx = true} : vector<16x1xf32> -> vector<16x1xf32>
    %205 = vector.broadcast %204 : vector<16x1xf32> to vector<16x16xf32>
    %206 = arith.mulf %201, %205 : vector<16x16xf32>
    %207 = arith.truncf %206 : vector<16x16xf32> to vector<16x16xbf16>
    %cst_68 = arith.constant dense<0.000000e+00> : vector<16x16xf32>
    %208 = tpu.matmul %207, %194, %cst_68 {dimension_numbers = #tpu.dot_dimension_numbers<[1], [0], [0], [1], [0, 0, 1, 1], [], []>} : vector<16x16xbf16>, vector<16x16xbf16>, vector<16x16xf32> -> vector<16x16xf32>
    %c536 = arith.constant 536 : index
    %c0_69 = arith.constant 0 : index
    %209 = vector.load %arg1[%c536, %c0_69] : memref<896x128xf32, #tpu.memory_space<vmem>>, vector<16x32xf32>
    %210 = arith.truncf %209 : vector<16x32xf32> to vector<16x32xbf16>
    %211 = arith.truncf %208 : vector<16x16xf32> to vector<16x16xbf16>
    %cst_70 = arith.constant dense<0.000000e+00> : vector<16x32xf32>
    %212 = tpu.matmul %211, %210, %cst_70 {dimension_numbers = #tpu.dot_dimension_numbers<[1], [0], [0], [1], [0, 0, 1, 1], [], []>} : vector<16x16xbf16>, vector<16x32xbf16>, vector<16x32xf32> -> vector<16x32xf32>
    %213 = vector.extract_strided_slice %176 {offsets = [0, 16], sizes = [16, 16], strides = [1, 1]} : vector<16x32xf32> to vector<16x16xf32>
    %214 = arith.truncf %213 : vector<16x16xf32> to vector<16x16xbf16>
    %215 = vector.extract_strided_slice %182 {offsets = [0, 16], sizes = [16, 16], strides = [1, 1]} : vector<16x32xf32> to vector<16x16xf32>
    %216 = arith.truncf %215 : vector<16x16xf32> to vector<16x16xbf16>
    %217 = vector.extract_strided_slice %188 {offsets = [0, 16], sizes = [16, 16], strides = [1, 1]} : vector<16x32xf32> to vector<16x16xf32>
    %218 = arith.truncf %217 : vector<16x16xf32> to vector<16x16xbf16>
    %cst_71 = arith.constant dense<0.000000e+00> : vector<16x16xf32>
    %219 = tpu.matmul %214, %216, %cst_71 {dimension_numbers = #tpu.dot_dimension_numbers<[1], [1], [0], [0], [0, 0, 1, 0], [], []>} : vector<16x16xbf16>, vector<16x16xbf16>, vector<16x16xf32> -> vector<16x16xf32>
    %220 = arith.addf %219, %0 : vector<16x16xf32>
    %cst_72 = arith.constant dense<0xFF800000> : vector<16xf32>
    %221 = vector.multi_reduction <maximumf>, %220, %cst_72 [1] : vector<16x16xf32> to vector<16xf32>
    %222 = vector.shape_cast %221 : vector<16xf32> to vector<16x1xf32>
    %223 = vector.broadcast %222 : vector<16x1xf32> to vector<16x16xf32>
    %224 = arith.subf %220, %223 : vector<16x16xf32>
    %225 = math.exp %224 : vector<16x16xf32>
    %cst_73 = arith.constant dense<0.000000e+00> : vector<16xf32>
    %226 = vector.multi_reduction <add>, %225, %cst_73 [1] : vector<16x16xf32> to vector<16xf32>
    %227 = vector.shape_cast %226 : vector<16xf32> to vector<16x1xf32>
    %228 = tpu.reciprocal %227 {approx = true} : vector<16x1xf32> -> vector<16x1xf32>
    %229 = vector.broadcast %228 : vector<16x1xf32> to vector<16x16xf32>
    %230 = arith.mulf %225, %229 : vector<16x16xf32>
    %231 = arith.truncf %230 : vector<16x16xf32> to vector<16x16xbf16>
    %cst_74 = arith.constant dense<0.000000e+00> : vector<16x16xf32>
    %232 = tpu.matmul %231, %218, %cst_74 {dimension_numbers = #tpu.dot_dimension_numbers<[1], [0], [0], [1], [0, 0, 1, 1], [], []>} : vector<16x16xbf16>, vector<16x16xbf16>, vector<16x16xf32> -> vector<16x16xf32>
    %c552 = arith.constant 552 : index
    %c0_75 = arith.constant 0 : index
    %233 = vector.load %arg1[%c552, %c0_75] : memref<896x128xf32, #tpu.memory_space<vmem>>, vector<16x32xf32>
    %234 = arith.truncf %233 : vector<16x32xf32> to vector<16x32xbf16>
    %235 = arith.truncf %232 : vector<16x16xf32> to vector<16x16xbf16>
    %cst_76 = arith.constant dense<0.000000e+00> : vector<16x32xf32>
    %236 = tpu.matmul %235, %234, %cst_76 {dimension_numbers = #tpu.dot_dimension_numbers<[1], [0], [0], [1], [0, 0, 1, 1], [], []>} : vector<16x16xbf16>, vector<16x32xbf16>, vector<16x32xf32> -> vector<16x32xf32>
    %237 = arith.addf %212, %236 : vector<16x32xf32>
    %c568 = arith.constant 568 : index
    %c0_77 = arith.constant 0 : index
    %238 = vector.load %arg1[%c568, %c0_77] : memref<896x128xf32, #tpu.memory_space<vmem>>, vector<1x32xf32>
    %239 = vector.broadcast %238 : vector<1x32xf32> to vector<16x32xf32>
    %240 = arith.addf %237, %239 : vector<16x32xf32>
    %241 = arith.addf %240, %169 : vector<16x32xf32>
    %c576 = arith.constant 576 : index
    %c0_78 = arith.constant 0 : index
    %242 = vector.load %arg1[%c576, %c0_78] : memref<896x128xf32, #tpu.memory_space<vmem>>, vector<1x32xf32>
    %c584 = arith.constant 584 : index
    %c0_79 = arith.constant 0 : index
    %243 = vector.load %arg1[%c584, %c0_79] : memref<896x128xf32, #tpu.memory_space<vmem>>, vector<1x32xf32>
    %cst_80 = arith.constant dense<0.000000e+00> : vector<16xf32>
    %244 = vector.multi_reduction <add>, %241, %cst_80 [1] : vector<16x32xf32> to vector<16xf32>
    %245 = vector.shape_cast %244 : vector<16xf32> to vector<16x1xf32>
    %cst_81 = arith.constant 3.200000e+01 : f32
    %246 = vector.broadcast %cst_81 : f32 to vector<16x1xf32>
    %247 = arith.divf %245, %246 : vector<16x1xf32>
    %248 = vector.broadcast %247 : vector<16x1xf32> to vector<16x32xf32>
    %249 = arith.subf %241, %248 : vector<16x32xf32>
    %250 = arith.mulf %249, %249 : vector<16x32xf32>
    %cst_82 = arith.constant dense<0.000000e+00> : vector<16xf32>
    %251 = vector.multi_reduction <add>, %250, %cst_82 [1] : vector<16x32xf32> to vector<16xf32>
    %252 = vector.shape_cast %251 : vector<16xf32> to vector<16x1xf32>
    %cst_83 = arith.constant 3.200000e+01 : f32
    %253 = vector.broadcast %cst_83 : f32 to vector<16x1xf32>
    %254 = arith.divf %252, %253 : vector<16x1xf32>
    %cst_84 = arith.constant 9.99999996E-13 : f32
    %255 = vector.broadcast %cst_84 : f32 to vector<16x1xf32>
    %256 = arith.addf %254, %255 : vector<16x1xf32>
    %257 = math.rsqrt %256 : vector<16x1xf32>
    %258 = vector.broadcast %257 : vector<16x1xf32> to vector<16x32xf32>
    %259 = arith.mulf %249, %258 : vector<16x32xf32>
    %260 = vector.broadcast %242 : vector<1x32xf32> to vector<16x32xf32>
    %261 = arith.mulf %259, %260 : vector<16x32xf32>
    %262 = vector.broadcast %243 : vector<1x32xf32> to vector<16x32xf32>
    %263 = arith.addf %261, %262 : vector<16x32xf32>
    %c592 = arith.constant 592 : index
    %c0_85 = arith.constant 0 : index
    %264 = vector.load %arg1[%c592, %c0_85] : memref<896x128xf32, #tpu.memory_space<vmem>>, vector<32x128xf32>
    %265 = arith.truncf %264 : vector<32x128xf32> to vector<32x128xbf16>
    %266 = arith.truncf %263 : vector<16x32xf32> to vector<16x32xbf16>
    %cst_86 = arith.constant dense<0.000000e+00> : vector<16x128xf32>
    %267 = tpu.matmul %266, %265, %cst_86 {dimension_numbers = #tpu.dot_dimension_numbers<[1], [0], [0], [1], [0, 0, 1, 1], [], []>} : vector<16x32xbf16>, vector<32x128xbf16>, vector<16x128xf32> -> vector<16x128xf32>
    %c624 = arith.constant 624 : index
    %c0_87 = arith.constant 0 : index
    %268 = vector.load %arg1[%c624, %c0_87] : memref<896x128xf32, #tpu.memory_space<vmem>>, vector<1x128xf32>
    %269 = vector.broadcast %268 : vector<1x128xf32> to vector<16x128xf32>
    %270 = arith.addf %267, %269 : vector<16x128xf32>
    %cst_88 = arith.constant 5.000000e-01 : f32
    %271 = vector.broadcast %cst_88 : f32 to vector<16x128xf32>
    %272 = arith.mulf %271, %270 : vector<16x128xf32>
    %cst_89 = arith.constant 4.471500e-02 : f32
    %273 = vector.broadcast %cst_89 : f32 to vector<16x128xf32>
    %274 = arith.mulf %273, %270 : vector<16x128xf32>
    %275 = arith.mulf %274, %270 : vector<16x128xf32>
    %276 = arith.mulf %275, %270 : vector<16x128xf32>
    %277 = arith.addf %270, %276 : vector<16x128xf32>
    %cst_90 = arith.constant 0.797884583 : f32
    %278 = vector.broadcast %cst_90 : f32 to vector<16x128xf32>
    %279 = arith.mulf %278, %277 : vector<16x128xf32>
    %280 = math.tanh %279 : vector<16x128xf32>
    %cst_91 = arith.constant 1.000000e+00 : f32
    %281 = vector.broadcast %cst_91 : f32 to vector<16x128xf32>
    %282 = arith.addf %281, %280 : vector<16x128xf32>
    %283 = arith.mulf %272, %282 : vector<16x128xf32>
    %c632 = arith.constant 632 : index
    %c0_92 = arith.constant 0 : index
    %284 = vector.load %arg1[%c632, %c0_92] : memref<896x128xf32, #tpu.memory_space<vmem>>, vector<128x32xf32>
    %285 = arith.truncf %284 : vector<128x32xf32> to vector<128x32xbf16>
    %286 = arith.truncf %283 : vector<16x128xf32> to vector<16x128xbf16>
    %cst_93 = arith.constant dense<0.000000e+00> : vector<16x32xf32>
    %287 = tpu.matmul %286, %285, %cst_93 {dimension_numbers = #tpu.dot_dimension_numbers<[1], [0], [0], [1], [0, 0, 1, 1], [], []>} : vector<16x128xbf16>, vector<128x32xbf16>, vector<16x32xf32> -> vector<16x32xf32>
    %c760 = arith.constant 760 : index
    %c0_94 = arith.constant 0 : index
    %288 = vector.load %arg1[%c760, %c0_94] : memref<896x128xf32, #tpu.memory_space<vmem>>, vector<1x32xf32>
    %289 = vector.broadcast %288 : vector<1x32xf32> to vector<16x32xf32>
    %290 = arith.addf %287, %289 : vector<16x32xf32>
    %291 = arith.addf %290, %263 : vector<16x32xf32>
    %c768 = arith.constant 768 : index
    %c0_95 = arith.constant 0 : index
    %292 = vector.load %arg1[%c768, %c0_95] : memref<896x128xf32, #tpu.memory_space<vmem>>, vector<1x32xf32>
    %c776 = arith.constant 776 : index
    %c0_96 = arith.constant 0 : index
    %293 = vector.load %arg1[%c776, %c0_96] : memref<896x128xf32, #tpu.memory_space<vmem>>, vector<1x32xf32>
    %cst_97 = arith.constant dense<0.000000e+00> : vector<16xf32>
    %294 = vector.multi_reduction <add>, %291, %cst_97 [1] : vector<16x32xf32> to vector<16xf32>
    %295 = vector.shape_cast %294 : vector<16xf32> to vector<16x1xf32>
    %cst_98 = arith.constant 3.200000e+01 : f32
    %296 = vector.broadcast %cst_98 : f32 to vector<16x1xf32>
    %297 = arith.divf %295, %296 : vector<16x1xf32>
    %298 = vector.broadcast %297 : vector<16x1xf32> to vector<16x32xf32>
    %299 = arith.subf %291, %298 : vector<16x32xf32>
    %300 = arith.mulf %299, %299 : vector<16x32xf32>
    %cst_99 = arith.constant dense<0.000000e+00> : vector<16xf32>
    %301 = vector.multi_reduction <add>, %300, %cst_99 [1] : vector<16x32xf32> to vector<16xf32>
    %302 = vector.shape_cast %301 : vector<16xf32> to vector<16x1xf32>
    %cst_100 = arith.constant 3.200000e+01 : f32
    %303 = vector.broadcast %cst_100 : f32 to vector<16x1xf32>
    %304 = arith.divf %302, %303 : vector<16x1xf32>
    %cst_101 = arith.constant 9.99999996E-13 : f32
    %305 = vector.broadcast %cst_101 : f32 to vector<16x1xf32>
    %306 = arith.addf %304, %305 : vector<16x1xf32>
    %307 = math.rsqrt %306 : vector<16x1xf32>
    %308 = vector.broadcast %307 : vector<16x1xf32> to vector<16x32xf32>
    %309 = arith.mulf %299, %308 : vector<16x32xf32>
    %310 = vector.broadcast %292 : vector<1x32xf32> to vector<16x32xf32>
    %311 = arith.mulf %309, %310 : vector<16x32xf32>
    %312 = vector.broadcast %293 : vector<1x32xf32> to vector<16x32xf32>
    %313 = arith.addf %311, %312 : vector<16x32xf32>
    %c784 = arith.constant 784 : index
    %c0_102 = arith.constant 0 : index
    %314 = vector.load %arg1[%c784, %c0_102] : memref<896x128xf32, #tpu.memory_space<vmem>>, vector<32x64xf32>
    %315 = arith.truncf %314 : vector<32x64xf32> to vector<32x64xbf16>
    %316 = arith.truncf %313 : vector<16x32xf32> to vector<16x32xbf16>
    %cst_103 = arith.constant dense<0.000000e+00> : vector<16x64xf32>
    %317 = tpu.matmul %316, %315, %cst_103 {dimension_numbers = #tpu.dot_dimension_numbers<[1], [0], [0], [1], [0, 0, 1, 1], [], []>} : vector<16x32xbf16>, vector<32x64xbf16>, vector<16x64xf32> -> vector<16x64xf32>
    %c816 = arith.constant 816 : index
    %c0_104 = arith.constant 0 : index
    %318 = vector.load %arg1[%c816, %c0_104] : memref<896x128xf32, #tpu.memory_space<vmem>>, vector<1x64xf32>
    %319 = vector.broadcast %318 : vector<1x64xf32> to vector<16x64xf32>
    %320 = arith.addf %317, %319 : vector<16x64xf32>
    %cst_105 = arith.constant 0.000000e+00 : f32
    %321 = vector.broadcast %cst_105 : f32 to vector<16x64xf32>
    %322 = arith.maximumf %320, %321 : vector<16x64xf32>
    %c824 = arith.constant 824 : index
    %c0_106 = arith.constant 0 : index
    %323 = vector.load %arg1[%c824, %c0_106] : memref<896x128xf32, #tpu.memory_space<vmem>>, vector<64x64xf32>
    %324 = arith.truncf %323 : vector<64x64xf32> to vector<64x64xbf16>
    %325 = arith.truncf %322 : vector<16x64xf32> to vector<16x64xbf16>
    %cst_107 = arith.constant dense<0.000000e+00> : vector<16x64xf32>
    %326 = tpu.matmul %325, %324, %cst_107 {dimension_numbers = #tpu.dot_dimension_numbers<[1], [0], [0], [1], [0, 0, 1, 1], [], []>} : vector<16x64xbf16>, vector<64x64xbf16>, vector<16x64xf32> -> vector<16x64xf32>
    %c888 = arith.constant 888 : index
    %c0_108 = arith.constant 0 : index
    %327 = vector.load %arg1[%c888, %c0_108] : memref<896x128xf32, #tpu.memory_space<vmem>>, vector<1x64xf32>
    %328 = vector.broadcast %327 : vector<1x64xf32> to vector<16x64xf32>
    %329 = arith.addf %326, %328 : vector<16x64xf32>
    %cst_109 = arith.constant 0.000000e+00 : f32
    %330 = vector.broadcast %cst_109 : f32 to vector<16x64xf32>
    %331 = arith.subf %330, %329 : vector<16x64xf32>
    %332 = math.exp %331 : vector<16x64xf32>
    %cst_110 = arith.constant 1.000000e+00 : f32
    %333 = vector.broadcast %cst_110 : f32 to vector<16x64xf32>
    %334 = arith.addf %333, %332 : vector<16x64xf32>
    %cst_111 = arith.constant 1.000000e+00 : f32
    %335 = vector.broadcast %cst_111 : f32 to vector<16x64xf32>
    %336 = arith.divf %335, %334 : vector<16x64xf32>
    %c0_112 = arith.constant 0 : index
    %c0_113 = arith.constant 0 : index
    %337 = vector.load %arg2[%c0_112, %c0_113] : memref<16x128xf32, #tpu.memory_space<vmem>>, vector<16x64xf32>
    tpu.vector_store %arg2[%c0_112, %c0_113], %322 {strides = array<i32>} : memref<16x128xf32, #tpu.memory_space<vmem>>, vector<16x64xf32>,
    %c0_114 = arith.constant 0 : index
    %c64 = arith.constant 64 : index
    %338 = vector.load %arg2[%c0_114, %c64] : memref<16x128xf32, #tpu.memory_space<vmem>>, vector<16x64xf32>
    tpu.vector_store %arg2[%c0_114, %c64], %336 {strides = array<i32>} : memref<16x128xf32, #tpu.memory_space<vmem>>, vector<16x64xf32>,
    return
  }
}

</mosaic_0001>

<llo_original>
// kernel: _lambda_.1
$region0: #{_lambda_.1}
  #allocation0 [shape = 'u32[]', space=smem, size = 0x4, offset = 0x4, fixed_abs, tag = 'smem constant byte address 0x4 - core index']
  #allocation1 [shape = 'u32[144,128]{1,0:T(1,128)}', space=vmem, size = 0x12000, scoped, tag = 'internal scratch']
  %s0 = inlined_call_operand.vmem [shape: f32[16,32], index: 0, kind: input, shape index: {}]
  %s1 = inlined_call_operand.hbm [shape: f32[896,128], index: 1, kind: input, shape index: {}]
  %s2 = inlined_call_operand.vmem [shape: f32[16,128], index: 2, kind: output, shape index: {}]
  %s3 = sld [smem:[#allocation0]]
  $region22: #{_lambda_.1} parent=0
    _
  %s5 = ssub.s32 1, %s3
  %s6 = scalar_select 0, %s5, %s3
  $region1: #{_lambda_.1} parent=0
    #allocation2 [shape = 'u8[458752]{0}', space=vmem, size = 0x70000, scoped, tag = 'input window, operand 1, single buffered']
    #allocation3 [shape = 's32[1]{0}', space=sflag, size = 0x4, scoped, tag = 'scoped memory for _lambda_.1']
    %7 = vsyncpa [#allocation3], 0
    // Predicated region
    $region2: #{_lambda_.1} parent=1 // pred_check
      _
    $region3: #{_lambda_.1} parent=1 // pred_check_branch
      %9 = sbr.rel (0) target = $region5
    $region4: #{_lambda_.1} parent=1 // pred_region
      _
    $region5: #{_lambda_.1} parent=1 // pred_fallthru
      _
    // Predicated region
    $region6: #{_lambda_.1} parent=1 // pred_check
      _
    $region7: #{_lambda_.1} parent=1 // pred_check_branch
      %11 = sbr.rel (0) target = $region9
    $region8: #{_lambda_.1} parent=1 // pred_region
      %s13 = ssub.s32 14336, 14336
      %14 = vsyncadd [#allocation3], %s13
      %s15 = sshll.u32 [#allocation2], 4
      %s16 = int_to_ptr.vmem [resolvable:$true] %s15
      %21 = dma.hbm_to_vmem [thread:$0]  %s1, 14336, %s16, [#allocation3], 128, 128, 8
    $region9: #{_lambda_.1} parent=1 // pred_fallthru
      _
    // Predicated region
    $region10: #{_lambda_.1} parent=1 // pred_check
      _
    $region11: #{_lambda_.1} parent=1 // pred_check_branch
      %23 = sbr.rel (0) target = $region13
    $region12: #{_lambda_.1} parent=1 // pred_region
      %24 = dma.done [#allocation3], 14336
    $region13: #{_lambda_.1} parent=1 // pred_fallthru
      _
    %v26 = vld [vmem:[#allocation2 + $0x20] sm:$0xff]
    %v27 = vld [vmem:[#allocation2 + $0x28] sm:$0xff]
    %v28 = vld [vmem:[%s0] sm:$0xff]
    %v29 = vld [vmem:[%s0 + $0x8] sm:$0xff]
    %v30 = vld [vmem:[#allocation2] sm:$0xff]
    %v31 = vld [vmem:[#allocation2 + $0x8] sm:$0xff]
    %v32 = vadd.f32 %v28, %v30
    %v33 = vadd.f32 %v29, %v31
    %v34 = vld [vmem:[#allocation2 + $0x10] sm:$0x1]
    %v35 = vld [vmem:[#allocation2 + $0x18] sm:$0x1]
    %vm36 = vcmask 261120
    %v37 = vsel %vm36, %v32, 0.0
    %38 = vadd.xlane.f32.xlu0 %v37
    %v39 = vpop.xlane.xlu0 %38
    %v40 = vsel %vm36, %v33, 0.0
    %41 = vadd.xlane.f32.xlu0 %v40
    %v42 = vpop.xlane.xlu0 %41
    %v43 = vrcp.pop 32.0
    %v44 = vmul.f32 %v39, %v43
    %v45 = vmul.f32 %v42, %v43
    %v46 = vsub.f32 %v32, %v44
    %v47 = vsub.f32 %v33, %v45
    %v48 = vmul.f32 %v46, %v46
    %v49 = vmul.f32 %v47, %v47
    %v50 = vsel %vm36, %v48, 0.0
    %51 = vadd.xlane.f32.xlu0 %v50
    %v52 = vpop.xlane.xlu0 %51
    %v53 = vsel %vm36, %v49, 0.0
    %54 = vadd.xlane.f32.xlu0 %v53
    %v55 = vpop.xlane.xlu0 %54
    %v56 = vmul.f32 %v52, %v43
    %v57 = vmul.f32 %v55, %v43
    %v58 = vadd.f32 %v56, 1e-12
    %v59 = vadd.f32 %v57, 1e-12
    %v60 = vrsqrt.pop %v58
    %v61 = vrsqrt.pop %v59
    %v62 = vmul.f32 %v46, %v60
    %v63 = vmul.f32 %v47, %v61
    %v64 = vlaneseq
    %v65 = vshrl.u32 %v64, 7
    %v66 = vsub.s32 0, %v65
    %v67 = vrot.slane %v34, %v66
    %v68 = vmul.f32 %v62, %v67
    %v69 = vmul.f32 %v63, %v67
    %v70 = vlaneseq
    %v71 = vshrl.u32 %v70, 7
    %v72 = vsub.s32 0, %v71
    %v73 = vrot.slane %v35, %v72
    %v74 = vadd.f32 %v68, %v73
    %v75 = vadd.f32 %v69, %v73
    %v76 = vpack.c.bf16 %v75, %v74
    %v77 = vld [vmem:[#allocation2 + $0x30] sm:$0xff]
    %v78 = vld [vmem:[#allocation2 + $0x38] sm:$0xff]
    %v79 = vld [vmem:[#allocation2 + $0x40] sm:$0xff]
    %v80 = vld [vmem:[#allocation2 + $0x48] sm:$0xff]
    %v81 = vpack.c.bf16 %v78, %v77
    %v82 = vpack.c.bf16 %v80, %v79
    %v83 = vld [vmem:[#allocation2 + $0x50] sm:$0x1]
    %v84 = vlaneseq
    %v85 = vshrl.u32 %v84, 7
    %v86 = vsub.s32 0, %v85
    %v87 = vrot.slane %v83, %v86
    %v89 = vsel %vm36, %v76, 0
    %91 = vmatprep.subr.bf16.mxu0 0
    %92 = vmatpush1.bf16.msra.mxu0 0
    %93 = vmatprep.subr.bf16.mxu0 0
    %94 = vmatpush1.bf16.msra.mxu0 0
    %95 = vmatprep.subr.bf16.mxu0 0
    %96 = vmatpush1.bf16.msra.mxu0 0
    %97 = vmatprep.subr.bf16.mxu0 0
    %98 = vmatpush1.bf16.msra.mxu0 0
    %99 = vmatprep.subr.bf16.mxu0 0
    %100 = vmatpush1.bf16.msra.mxu0 0
    %101 = vmatprep.subr.bf16.mxu0 0
    %102 = vmatpush1.bf16.msra.mxu0 0
    %103 = vmatprep.subr.bf16.mxu0 0
    %104 = vmatpush1.bf16.msra.mxu0 %v82
    %105 = vmatprep.subr.bf16.mxu0 0
    %106 = vmatpush1.bf16.msra.mxu0 %v81
    %107 = vmatprep.subr.bf16.mxu0 0
    %108 = vmatpush2.bf16.msra.mxu0 0
    %109 = vmatprep.subr.bf16.mxu0 0
    %110 = vmatpush2.bf16.msra.mxu0 0
    %111 = vmatprep.subr.bf16.mxu0 0
    %112 = vmatpush2.bf16.msra.mxu0 0
    %113 = vmatprep.subr.bf16.mxu0 0
    %114 = vmatpush2.bf16.msra.mxu0 0
    %115 = vmatprep.subr.bf16.mxu0 0
    %116 = vmatpush2.bf16.msra.mxu0 0
    %117 = vmatprep.subr.bf16.mxu0 0
    %118 = vmatpush2.bf16.msra.mxu0 0
    %119 = vmatprep.subr.bf16.mxu0 0
    %120 = vmatpush2.bf16.msra.mxu0 0
    %121 = vmatprep.subr.bf16.mxu0 0
    %122 = vmatpush2.bf16.msra.mxu0 0
    %123 = vmatprep.mubr.bf16.mxu0 0
    %124 = vmatmul.mubr.bf16.gmra.mxu0 %v89
    %v125 = vpop.f32.mrf.mxu0
    %v126 = vadd.f32 %v87, %v125
    %v127 = vpop.f32.mrf.mxu0
    %v128 = vpop.f32.mrf.mxu0
    %v129 = vadd.f32 %v87, %v128
    %v130 = vpop.f32.mrf.mxu0
    %131 = vdwg.mxu0
    %v132 = vld [vmem:[#allocation2 + $0x58] sm:$0xff]
    %v133 = vld [vmem:[#allocation2 + $0x60] sm:$0xff]
    %v134 = vld [vmem:[#allocation2 + $0x68] sm:$0xff]
    %v135 = vld [vmem:[#allocation2 + $0x70] sm:$0xff]
    %v136 = vpack.c.bf16 %v133, %v132
    %v137 = vpack.c.bf16 %v135, %v134
    %v138 = vld [vmem:[#allocation2 + $0x78] sm:$0x1]
    %v139 = vlaneseq
    %v140 = vshrl.u32 %v139, 7
    %v141 = vsub.s32 0, %v140
    %v142 = vrot.slane %v138, %v141
    %143 = vmatprep.subr.bf16.mxu0 0
    %144 = vmatpush1.bf16.msra.mxu0 0
    %145 = vmatprep.subr.bf16.mxu0 0
    %146 = vmatpush1.bf16.msra.mxu0 0
    %147 = vmatprep.subr.bf16.mxu0 0
    %148 = vmatpush1.bf16.msra.mxu0 0
    %149 = vmatprep.subr.bf16.mxu0 0
    %150 = vmatpush1.bf16.msra.mxu0 0
    %151 = vmatprep.subr.bf16.mxu0 0
    %152 = vmatpush1.bf16.msra.mxu0 0
    %153 = vmatprep.subr.bf16.mxu0 0
    %154 = vmatpush1.bf16.msra.mxu0 0
    %155 = vmatprep.subr.bf16.mxu0 0
    %156 = vmatpush1.bf16.msra.mxu0 %v137
    %157 = vmatprep.subr.bf16.mxu0 0
    %158 = vmatpush1.bf16.msra.mxu0 %v136
    %159 = vmatprep.subr.bf16.mxu0 0
    %160 = vmatpush2.bf16.msra.mxu0 0
    %161 = vmatprep.subr.bf16.mxu0 0
    %162 = vmatpush2.bf16.msra.mxu0 0
    %163 = vmatprep.subr.bf16.mxu0 0
    %164 = vmatpush2.bf16.msra.mxu0 0
    %165 = vmatprep.subr.bf16.mxu0 0
    %166 = vmatpush2.bf16.msra.mxu0 0
    %167 = vmatprep.subr.bf16.mxu0 0
    %168 = vmatpush2.bf16.msra.mxu0 0
    %169 = vmatprep.subr.bf16.mxu0 0
    %170 = vmatpush2.bf16.msra.mxu0 0
    %171 = vmatprep.subr.bf16.mxu0 0
    %172 = vmatpush2.bf16.msra.mxu0 0
    %173 = vmatprep.subr.bf16.mxu0 0
    %174 = vmatpush2.bf16.msra.mxu0 0
    %175 = vmatprep.mubr.bf16.mxu0 0
    %176 = vmatmul.mubr.bf16.gmra.mxu0 %v89
    %v177 = vpop.f32.mrf.mxu0
    %v178 = vadd.f32 %v142, %v177
    %v179 = vpop.f32.mrf.mxu0
    %v180 = vpop.f32.mrf.mxu0
    %v181 = vadd.f32 %v142, %v180
    %v182 = vpop.f32.mrf.mxu0
    %183 = vdwg.mxu0
    %v184 = vld [vmem:[#allocation2 + $0x80] sm:$0xff]
    %v185 = vld [vmem:[#allocation2 + $0x88] sm:$0xff]
    %v186 = vld [vmem:[#allocation2 + $0x90] sm:$0xff]
    %v187 = vld [vmem:[#allocation2 + $0x98] sm:$0xff]
    %v188 = vpack.c.bf16 %v185, %v184
    %v189 = vpack.c.bf16 %v187, %v186
    %v190 = vld [vmem:[#allocation2 + $0xa0] sm:$0x1]
    %v191 = vlaneseq
    %v192 = vshrl.u32 %v191, 7
    %v193 = vsub.s32 0, %v192
    %v194 = vrot.slane %v190, %v193
    %195 = vmatprep.subr.bf16.mxu0 0
    %196 = vmatpush1.bf16.msra.mxu0 0
    %197 = vmatprep.subr.bf16.mxu0 0
    %198 = vmatpush1.bf16.msra.mxu0 0
    %199 = vmatprep.subr.bf16.mxu0 0
    %200 = vmatpush1.bf16.msra.mxu0 0
    %201 = vmatprep.subr.bf16.mxu0 0
    %202 = vmatpush1.bf16.msra.mxu0 0
    %203 = vmatprep.subr.bf16.mxu0 0
    %204 = vmatpush1.bf16.msra.mxu0 0
    %205 = vmatprep.subr.bf16.mxu0 0
    %206 = vmatpush1.bf16.msra.mxu0 0
    %207 = vmatprep.subr.bf16.mxu0 0
    %208 = vmatpush1.bf16.msra.mxu0 %v189
    %209 = vmatprep.subr.bf16.mxu0 0
    %210 = vmatpush1.bf16.msra.mxu0 %v188
    %211 = vmatprep.subr.bf16.mxu0 0
    %212 = vmatpush2.bf16.msra.mxu0 0
    %213 = vmatprep.subr.bf16.mxu0 0
    %214 = vmatpush2.bf16.msra.mxu0 0
    %215 = vmatprep.subr.bf16.mxu0 0
    %216 = vmatpush2.bf16.msra.mxu0 0
    %217 = vmatprep.subr.bf16.mxu0 0
    %218 = vmatpush2.bf16.msra.mxu0 0
    %219 = vmatprep.subr.bf16.mxu0 0
    %220 = vmatpush2.bf16.msra.mxu0 0
    %221 = vmatprep.subr.bf16.mxu0 0
    %222 = vmatpush2.bf16.msra.mxu0 0
    %223 = vmatprep.subr.bf16.mxu0 0
    %224 = vmatpush2.bf16.msra.mxu0 0
    %225 = vmatprep.subr.bf16.mxu0 0
    %226 = vmatpush2.bf16.msra.mxu0 0
    %227 = vmatprep.mubr.bf16.mxu0 0
    %228 = vmatmul.mubr.bf16.gmra.mxu0 %v89
    %v229 = vpop.f32.mrf.mxu0
    %v230 = vadd.f32 %v194, %v229
    %v231 = vpop.f32.mrf.mxu0
    %v232 = vpop.f32.mrf.mxu0
    %v233 = vadd.f32 %v194, %v232
    %v234 = vpop.f32.mrf.mxu0
    %235 = vdwg.mxu0
    %v236 = vpack.c.bf16 %v129, %v126
    %v237 = vpack.c.bf16 %v181, %v178
    %v238 = vpack.c.bf16 %v233, %v230
    %vm239 = vcmask 130048
    %v241 = vsel %vm239, %v236, 0
    %v244 = vsel %vm239, %v237, 0
    %246 = vmatprep.subr.bf16.mxu0 0
    %247 = vmatpush1.bf16.xpose.msra.mxu0 0
    %248 = vmatprep.subr.bf16.mxu0 0
    %249 = vmatpush1.bf16.xpose.msra.mxu0 0
    %250 = vmatprep.subr.bf16.mxu0 0
    %251 = vmatpush1.bf16.xpose.msra.mxu0 0
    %252 = vmatprep.subr.bf16.mxu0 0
    %253 = vmatpush1.bf16.xpose.msra.mxu0 0
    %254 = vmatprep.subr.bf16.mxu0 0
    %255 = vmatpush1.bf16.xpose.msra.mxu0 0
    %256 = vmatprep.subr.bf16.mxu0 0
    %257 = vmatpush1.bf16.xpose.msra.mxu0 0
    %258 = vmatprep.subr.bf16.mxu0 0
    %259 = vmatpush1.bf16.xpose.msra.mxu0 0
    %260 = vmatprep.subr.bf16.mxu0 0
    %261 = vmatpush1.bf16.xpose.msra.mxu0 %v244
    %262 = vmatprep.subr.bf16.mxu0 0
    %263 = vmatpush2.bf16.xpose.msra.mxu0 0
    %264 = vmatprep.subr.bf16.mxu0 0
    %265 = vmatpush2.bf16.xpose.msra.mxu0 0
    %266 = vmatprep.subr.bf16.mxu0 0
    %267 = vmatpush2.bf16.xpose.msra.mxu0 0
    %268 = vmatprep.subr.bf16.mxu0 0
    %269 = vmatpush2.bf16.xpose.msra.mxu0 0
    %270 = vmatprep.subr.bf16.mxu0 0
    %271 = vmatpush2.bf16.xpose.msra.mxu0 0
    %272 = vmatprep.subr.bf16.mxu0 0
    %273 = vmatpush2.bf16.xpose.msra.mxu0 0
    %274 = vmatprep.subr.bf16.mxu0 0
    %275 = vmatpush2.bf16.xpose.msra.mxu0 0
    %276 = vmatprep.subr.bf16.mxu0 0
    %277 = vmatpush2.bf16.xpose.msra.mxu0 0
    %278 = vmatprep.mubr.bf16.mxu0 0
    %279 = vmatmul.mubr.bf16.gmra.mxu0 %v241
    %v280 = vpop.f32.mrf.mxu0
    %v281 = vadd.f32 %v26, %v280
    %v282 = vpop.f32.mrf.mxu0
    %v283 = vpop.f32.mrf.mxu0
    %v284 = vadd.f32 %v27, %v283
    %v285 = vpop.f32.mrf.mxu0
    %286 = vdwg.mxu0
    %v287 = vsel %vm239, %v281, -inf
    %288 = vmax.xlane.f32.xlu0 %v287
    %v289 = vpop.xlane.xlu0 %288
    %v290 = vsel %vm239, %v284, -inf
    %291 = vmax.xlane.f32.xlu0 %v290
    %v292 = vpop.xlane.xlu0 %291
    %v293 = vsub.f32 %v281, %v289
    %v294 = vsub.f32 %v284, %v292
    %v295 = vmul.f32 %v293, 1.442695
    %v296 = vpow.pop %v295
    %v297 = vmul.f32 %v294, 1.442695
    %v298 = vpow.pop %v297
    %v299 = vsel %vm239, %v296, 0.0
    %300 = vadd.xlane.f32.xlu0 %v299
    %v301 = vpop.xlane.xlu0 %300
    %v302 = vsel %vm239, %v298, 0.0
    %303 = vadd.xlane.f32.xlu0 %v302
    %v304 = vpop.xlane.xlu0 %303
    %v305 = vrcp.pop %v301
    %v306 = vrcp.pop %v304
    %v307 = vmul.f32 %v296, %v305
    %v308 = vmul.f32 %v298, %v306
    %v309 = vpack.c.bf16 %v308, %v307
    %v311 = vsel %vm239, %v309, 0
    %313 = vmatprep.subr.bf16.mxu0 0
    %314 = vmatpush1.bf16.msra.mxu0 0
    %315 = vmatprep.subr.bf16.mxu0 0
    %316 = vmatpush1.bf16.msra.mxu0 0
    %317 = vmatprep.subr.bf16.mxu0 0
    %318 = vmatpush1.bf16.msra.mxu0 0
    %319 = vmatprep.subr.bf16.mxu0 0
    %320 = vmatpush1.bf16.msra.mxu0 0
    %321 = vmatprep.subr.bf16.mxu0 0
    %322 = vmatpush1.bf16.msra.mxu0 0
    %323 = vmatprep.subr.bf16.mxu0 0
    %324 = vmatpush1.bf16.msra.mxu0 0
    %325 = vmatprep.subr.bf16.mxu0 0
    %326 = vmatpush1.bf16.msra.mxu0 0
    %327 = vmatprep.subr.bf16.mxu0 0
    %328 = vmatpush1.bf16.msra.mxu0 %v238
    %329 = vmatprep.subr.bf16.mxu0 0
    %330 = vmatpush2.bf16.msra.mxu0 0
    %331 = vmatprep.subr.bf16.mxu0 0
    %332 = vmatpush2.bf16.msra.mxu0 0
    %333 = vmatprep.subr.bf16.mxu0 0
    %334 = vmatpush2.bf16.msra.mxu0 0
    %335 = vmatprep.subr.bf16.mxu0 0
    %336 = vmatpush2.bf16.msra.mxu0 0
    %337 = vmatprep.subr.bf16.mxu0 0
    %338 = vmatpush2.bf16.msra.mxu0 0
    %339 = vmatprep.subr.bf16.mxu0 0
    %340 = vmatpush2.bf16.msra.mxu0 0
    %341 = vmatprep.subr.bf16.mxu0 0
    %342 = vmatpush2.bf16.msra.mxu0 0
    %343 = vmatprep.subr.bf16.mxu0 0
    %344 = vmatpush2.bf16.msra.mxu0 0
    %345 = vmatprep.mubr.bf16.mxu0 0
    %346 = vmatmul.mubr.bf16.gmra.mxu0 %v311
    %v347 = vpop.f32.mrf.mxu0
    %v348 = vadd.f32 0.0, %v347
    %v349 = vpop.f32.mrf.mxu0
    %v350 = vpop.f32.mrf.mxu0
    %v351 = vadd.f32 0.0, %v350
    %v352 = vpop.f32.mrf.mxu0
    %353 = vdwg.mxu0
    %v354 = vld [vmem:[#allocation2 + $0xa8] sm:$0xff]
    %v355 = vld [vmem:[#allocation2 + $0xb0] sm:$0xff]
    %v356 = vpack.c.bf16 %v355, %v354
    %v357 = vpack.c.bf16 %v351, %v348
    %359 = vrot.lane.b32.xlu0 %v236, 112
    %v360 = vpop.permute.xlu0 %359
    %362 = vrot.lane.b32.xlu0 %v237, 112
    %v363 = vpop.permute.xlu0 %362
    %v365 = vsel %vm239, %v360, 0
    %v368 = vsel %vm239, %v363, 0
    %370 = vmatprep.subr.bf16.mxu0 0
    %371 = vmatpush1.bf16.xpose.msra.mxu0 0
    %372 = vmatprep.subr.bf16.mxu0 0
    %373 = vmatpush1.bf16.xpose.msra.mxu0 0
    %374 = vmatprep.subr.bf16.mxu0 0
    %375 = vmatpush1.bf16.xpose.msra.mxu0 0
    %376 = vmatprep.subr.bf16.mxu0 0
    %377 = vmatpush1.bf16.xpose.msra.mxu0 0
    %378 = vmatprep.subr.bf16.mxu0 0
    %379 = vmatpush1.bf16.xpose.msra.mxu0 0
    %380 = vmatprep.subr.bf16.mxu0 0
    %381 = vmatpush1.bf16.xpose.msra.mxu0 0
    %382 = vmatprep.subr.bf16.mxu0 0
    %383 = vmatpush1.bf16.xpose.msra.mxu0 0
    %384 = vmatprep.subr.bf16.mxu0 0
    %385 = vmatpush1.bf16.xpose.msra.mxu0 %v368
    %386 = vmatprep.subr.bf16.mxu0 0
    %387 = vmatpush2.bf16.xpose.msra.mxu0 0
    %388 = vmatprep.subr.bf16.mxu0 0
    %389 = vmatpush2.bf16.xpose.msra.mxu0 0
    %390 = vmatprep.subr.bf16.mxu0 0
    %391 = vmatpush2.bf16.xpose.msra.mxu0 0
    %392 = vmatprep.subr.bf16.mxu0 0
    %393 = vmatpush2.bf16.xpose.msra.mxu0 0
    %394 = vmatprep.subr.bf16.mxu0 0
    %395 = vmatpush2.bf16.xpose.msra.mxu0 0
    %396 = vmatprep.subr.bf16.mxu0 0
    %397 = vmatpush2.bf16.xpose.msra.mxu0 0
    %398 = vmatprep.subr.bf16.mxu0 0
    %399 = vmatpush2.bf16.xpose.msra.mxu0 0
    %400 = vmatprep.subr.bf16.mxu0 0
    %401 = vmatpush2.bf16.xpose.msra.mxu0 0
    %402 = vmatprep.mubr.bf16.mxu0 0
    %403 = vmatmul.mubr.bf16.gmra.mxu0 %v365
    %v404 = vpop.f32.mrf.mxu0
    %v405 = vadd.f32 %v26, %v404
    %v406 = vpop.f32.mrf.mxu0
    %v407 = vpop.f32.mrf.mxu0
    %v408 = vadd.f32 %v27, %v407
    %v409 = vpop.f32.mrf.mxu0
    %410 = vdwg.mxu0
    %v411 = vsel %vm239, %v405, -inf
    %412 = vmax.xlane.f32.xlu0 %v411
    %v413 = vpop.xlane.xlu0 %412
    %v414 = vsel %vm239, %v408, -inf
    %415 = vmax.xlane.f32.xlu0 %v414
    %v416 = vpop.xlane.xlu0 %415
    %v417 = vsub.f32 %v405, %v413
    %v418 = vsub.f32 %v408, %v416
    %v419 = vmul.f32 %v417, 1.442695
    %v420 = vpow.pop %v419
    %v421 = vmul.f32 %v418, 1.442695
    %v422 = vpow.pop %v421
    %v423 = vsel %vm239, %v420, 0.0
    %424 = vadd.xlane.f32.xlu0 %v423
    %v425 = vpop.xlane.xlu0 %424
    %v426 = vsel %vm239, %v422, 0.0
    %427 = vadd.xlane.f32.xlu0 %v426
    %v428 = vpop.xlane.xlu0 %427
    %v429 = vrcp.pop %v425
    %v430 = vrcp.pop %v428
    %v431 = vmul.f32 %v420, %v429
    %v432 = vmul.f32 %v422, %v430
    %v433 = vpack.c.bf16 %v432, %v431
    %435 = vrot.lane.b32.xlu0 %v238, 112
    %v436 = vpop.permute.xlu0 %435
    %v439 = vsel %vm239, %v433, 0
    %441 = vmatprep.subr.bf16.mxu0 0
    %442 = vmatpush1.bf16.msra.mxu0 0
    %443 = vmatprep.subr.bf16.mxu0 0
    %444 = vmatpush1.bf16.msra.mxu0 0
    %445 = vmatprep.subr.bf16.mxu0 0
    %446 = vmatpush1.bf16.msra.mxu0 0
    %447 = vmatprep.subr.bf16.mxu0 0
    %448 = vmatpush1.bf16.msra.mxu0 0
    %449 = vmatprep.subr.bf16.mxu0 0
    %450 = vmatpush1.bf16.msra.mxu0 0
    %451 = vmatprep.subr.bf16.mxu0 0
    %452 = vmatpush1.bf16.msra.mxu0 0
    %453 = vmatprep.subr.bf16.mxu0 0
    %454 = vmatpush1.bf16.msra.mxu0 0
    %455 = vmatprep.subr.bf16.mxu0 0
    %456 = vmatpush1.bf16.msra.mxu0 %v436
    %457 = vmatprep.subr.bf16.mxu0 0
    %458 = vmatpush2.bf16.msra.mxu0 0
    %459 = vmatprep.subr.bf16.mxu0 0
    %460 = vmatpush2.bf16.msra.mxu0 0
    %461 = vmatprep.subr.bf16.mxu0 0
    %462 = vmatpush2.bf16.msra.mxu0 0
    %463 = vmatprep.subr.bf16.mxu0 0
    %464 = vmatpush2.bf16.msra.mxu0 0
    %465 = vmatprep.subr.bf16.mxu0 0
    %466 = vmatpush2.bf16.msra.mxu0 0
    %467 = vmatprep.subr.bf16.mxu0 0
    %468 = vmatpush2.bf16.msra.mxu0 0
    %469 = vmatprep.subr.bf16.mxu0 0
    %470 = vmatpush2.bf16.msra.mxu0 0
    %471 = vmatprep.subr.bf16.mxu0 0
    %472 = vmatpush2.bf16.msra.mxu0 0
    %473 = vmatprep.mubr.bf16.mxu0 0
    %474 = vmatmul.mubr.bf16.gmra.mxu0 %v439
    %v475 = vpop.f32.mrf.mxu0
    %v476 = vadd.f32 0.0, %v475
    %v477 = vpop.f32.mrf.mxu0
    %v478 = vpop.f32.mrf.mxu0
    %v479 = vadd.f32 0.0, %v478
    %v480 = vpop.f32.mrf.mxu0
    %481 = vdwg.mxu0
    %v482 = vld [vmem:[#allocation2 + $0xb8] sm:$0xff]
    %v483 = vld [vmem:[#allocation2 + $0xc0] sm:$0xff]
    %v484 = vpack.c.bf16 %v483, %v482
    %v485 = vpack.c.bf16 %v479, %v476
    %v487 = vsel %vm239, %v485, 0
    %489 = vmatprep.subr.bf16.mxu0 0
    %490 = vmatpush1.bf16.msra.mxu0 0
    %491 = vmatprep.subr.bf16.mxu0 0
    %492 = vmatpush1.bf16.msra.mxu0 0
    %493 = vmatprep.subr.bf16.mxu0 0
    %494 = vmatpush1.bf16.msra.mxu0 0
    %495 = vmatprep.subr.bf16.mxu0 0
    %496 = vmatpush1.bf16.msra.mxu0 0
    %497 = vmatprep.subr.bf16.mxu0 0
    %498 = vmatpush1.bf16.msra.mxu0 0
    %499 = vmatprep.subr.bf16.mxu0 0
    %500 = vmatpush1.bf16.msra.mxu0 0
    %501 = vmatprep.subr.bf16.mxu0 0
    %502 = vmatpush1.bf16.msra.mxu0 0
    %503 = vmatprep.subr.bf16.mxu0 0
    %504 = vmatpush1.bf16.msra.mxu0 %v484
    %505 = vmatprep.subr.bf16.mxu0 0
    %506 = vmatpush2.bf16.msra.mxu0 0
    %507 = vmatprep.subr.bf16.mxu0 0
    %508 = vmatpush2.bf16.msra.mxu0 0
    %509 = vmatprep.subr.bf16.mxu0 0
    %510 = vmatpush2.bf16.msra.mxu0 0
    %511 = vmatprep.subr.bf16.mxu0 0
    %512 = vmatpush2.bf16.msra.mxu0 0
    %513 = vmatprep.subr.bf16.mxu0 0
    %514 = vmatpush2.bf16.msra.mxu0 0
    %515 = vmatprep.subr.bf16.mxu0 0
    %516 = vmatpush2.bf16.msra.mxu0 0
    %517 = vmatprep.subr.bf16.mxu0 0
    %518 = vmatpush2.bf16.msra.mxu0 0
    %519 = vmatprep.subr.bf16.mxu0 0
    %520 = vmatpush2.bf16.msra.mxu0 0
    %521 = vmatprep.mubr.bf16.mxu0 0
    %522 = vmatmul.mubr.bf16.gmra.mxu0 %v487
    %v523 = vpop.f32.mrf.mxu0
    %v524 = vadd.f32 0.0, %v523
    %v525 = vpop.f32.mrf.mxu0
    %v526 = vpop.f32.mrf.mxu0
    %v527 = vadd.f32 0.0, %v526
    %v528 = vpop.f32.mrf.mxu0
    %529 = vdwg.mxu0
    %v531 = vsel %vm239, %v357, 0
    %533 = vmatprep.subr.bf16.mxu0 0
    %534 = vmatpush1.bf16.msra.mxu0 0
    %535 = vmatprep.subr.bf16.mxu0 0
    %536 = vmatpush1.bf16.msra.mxu0 0
    %537 = vmatprep.subr.bf16.mxu0 0
    %538 = vmatpush1.bf16.msra.mxu0 0
    %539 = vmatprep.subr.bf16.mxu0 0
    %540 = vmatpush1.bf16.msra.mxu0 0
    %541 = vmatprep.subr.bf16.mxu0 0
    %542 = vmatpush1.bf16.msra.mxu0 0
    %543 = vmatprep.subr.bf16.mxu0 0
    %544 = vmatpush1.bf16.msra.mxu0 0
    %545 = vmatprep.subr.bf16.mxu0 0
    %546 = vmatpush1.bf16.msra.mxu0 0
    %547 = vmatprep.subr.bf16.mxu0 0
    %548 = vmatpush1.bf16.msra.mxu0 %v356
    %549 = vmatprep.subr.bf16.mxu0 0
    %550 = vmatpush2.bf16.msra.mxu0 0
    %551 = vmatprep.subr.bf16.mxu0 0
    %552 = vmatpush2.bf16.msra.mxu0 0
    %553 = vmatprep.subr.bf16.mxu0 0
    %554 = vmatpush2.bf16.msra.mxu0 0
    %555 = vmatprep.subr.bf16.mxu0 0
    %556 = vmatpush2.bf16.msra.mxu0 0
    %557 = vmatprep.subr.bf16.mxu0 0
    %558 = vmatpush2.bf16.msra.mxu0 0
    %559 = vmatprep.subr.bf16.mxu0 0
    %560 = vmatpush2.bf16.msra.mxu0 0
    %561 = vmatprep.subr.bf16.mxu0 0
    %562 = vmatpush2.bf16.msra.mxu0 0
    %563 = vmatprep.subr.bf16.mxu0 0
    %564 = vmatpush2.bf16.msra.mxu0 0
    %565 = vmatprep.mubr.bf16.mxu0 0
    %566 = vmatmul.mubr.bf16.gmra.mxu0 %v531
    %v567 = vpop.f32.mrf.mxu0
    %v568 = vadd.f32 %v524, %v567
    %v569 = vpop.f32.mrf.mxu0
    %v570 = vpop.f32.mrf.mxu0
    %v571 = vadd.f32 %v527, %v570
    %v572 = vpop.f32.mrf.mxu0
    %573 = vdwg.mxu0
    %v574 = vld [vmem:[#allocation2 + $0xc8] sm:$0x1]
    %v575 = vlaneseq
    %v576 = vshrl.u32 %v575, 7
    %v577 = vsub.s32 0, %v576
    %v578 = vrot.slane %v574, %v577
    %v579 = vadd.f32 %v568, %v578
    %v580 = vadd.f32 %v571, %v578
    %v581 = vadd.f32 %v579, %v74
    %v582 = vadd.f32 %v580, %v75
    %v583 = vld [vmem:[#allocation2 + $0xd0] sm:$0x1]
    %v584 = vld [vmem:[#allocation2 + $0xd8] sm:$0x1]
    %v585 = vsel %vm36, %v581, 0.0
    %586 = vadd.xlane.f32.xlu0 %v585
    %v587 = vpop.xlane.xlu0 %586
    %v588 = vsel %vm36, %v582, 0.0
    %589 = vadd.xlane.f32.xlu0 %v588
    %v590 = vpop.xlane.xlu0 %589
    %v591 = vmul.f32 %v587, %v43
    %v592 = vmul.f32 %v590, %v43
    %v593 = vsub.f32 %v581, %v591
    %v594 = vsub.f32 %v582, %v592
    %v595 = vmul.f32 %v593, %v593
    %v596 = vmul.f32 %v594, %v594
    %v597 = vsel %vm36, %v595, 0.0
    %598 = vadd.xlane.f32.xlu0 %v597
    %v599 = vpop.xlane.xlu0 %598
    %v600 = vsel %vm36, %v596, 0.0
    %601 = vadd.xlane.f32.xlu0 %v600
    %v602 = vpop.xlane.xlu0 %601
    %v603 = vmul.f32 %v599, %v43
    %v604 = vmul.f32 %v602, %v43
    %v605 = vadd.f32 %v603, 1e-12
    %v606 = vadd.f32 %v604, 1e-12
    %v607 = vrsqrt.pop %v605
    %v608 = vrsqrt.pop %v606
    %v609 = vmul.f32 %v593, %v607
    %v610 = vmul.f32 %v594, %v608
    %v611 = vlaneseq
    %v612 = vshrl.u32 %v611, 7
    %v613 = vsub.s32 0, %v612
    %v614 = vrot.slane %v583, %v613
    %v615 = vmul.f32 %v609, %v614
    %v616 = vmul.f32 %v610, %v614
    %v617 = vlaneseq
    %v618 = vshrl.u32 %v617, 7
    %v619 = vsub.s32 0, %v618
    %v620 = vrot.slane %v584, %v619
    %v621 = vadd.f32 %v615, %v620
    %v622 = vadd.f32 %v616, %v620
    %v623 = vld [vmem:[#allocation2 + $0xe0] sm:$0xff]
    %v624 = vld [vmem:[#allocation2 + $0xe8] sm:$0xff]
    %v625 = vld [vmem:[#allocation2 + $0xf0] sm:$0xff]
    %v626 = vld [vmem:[#allocation2 + $0xf8] sm:$0xff]
    %v627 = vpack.c.bf16 %v624, %v623
    %v628 = vpack.c.bf16 %v626, %v625
    %v629 = vpack.c.bf16 %v622, %v621
    %v630 = vld [vmem:[#allocation2 + $0x100] sm:$0x1]
    %v631 = vlaneseq
    %v632 = vshrl.u32 %v631, 7
    %v633 = vsub.s32 0, %v632
    %v634 = vrot.slane %v630, %v633
    %v636 = vsel %vm36, %v629, 0
    %638 = vmatprep.subr.bf16.mxu0 0
    %639 = vmatpush1.bf16.msra.mxu0 0
    %640 = vmatprep.subr.bf16.mxu0 0
    %641 = vmatpush1.bf16.msra.mxu0 0
    %642 = vmatprep.subr.bf16.mxu0 0
    %643 = vmatpush1.bf16.msra.mxu0 0
    %644 = vmatprep.subr.bf16.mxu0 0
    %645 = vmatpush1.bf16.msra.mxu0 0
    %646 = vmatprep.subr.bf16.mxu0 0
    %647 = vmatpush1.bf16.msra.mxu0 0
    %648 = vmatprep.subr.bf16.mxu0 0
    %649 = vmatpush1.bf16.msra.mxu0 0
    %650 = vmatprep.subr.bf16.mxu0 0
    %651 = vmatpush1.bf16.msra.mxu0 %v628
    %652 = vmatprep.subr.bf16.mxu0 0
    %653 = vmatpush1.bf16.msra.mxu0 %v627
    %654 = vmatprep.subr.bf16.mxu0 0
    %655 = vmatpush2.bf16.msra.mxu0 0
    %656 = vmatprep.subr.bf16.mxu0 0
    %657 = vmatpush2.bf16.msra.mxu0 0
    %658 = vmatprep.subr.bf16.mxu0 0
    %659 = vmatpush2.bf16.msra.mxu0 0
    %660 = vmatprep.subr.bf16.mxu0 0
    %661 = vmatpush2.bf16.msra.mxu0 0
    %662 = vmatprep.subr.bf16.mxu0 0
    %663 = vmatpush2.bf16.msra.mxu0 0
    %664 = vmatprep.subr.bf16.mxu0 0
    %665 = vmatpush2.bf16.msra.mxu0 0
    %666 = vmatprep.subr.bf16.mxu0 0
    %667 = vmatpush2.bf16.msra.mxu0 0
    %668 = vmatprep.subr.bf16.mxu0 0
    %669 = vmatpush2.bf16.msra.mxu0 0
    %670 = vmatprep.mubr.bf16.mxu0 0
    %671 = vmatmul.mubr.bf16.gmra.mxu0 %v636
    %v672 = vpop.f32.mrf.mxu0
    %v673 = vadd.f32 %v634, %v672
    %v674 = vpop.f32.mrf.mxu0
    %v675 = vpop.f32.mrf.mxu0
    %v676 = vadd.f32 %v634, %v675
    %v677 = vpop.f32.mrf.mxu0
    %678 = vdwg.mxu0
    %v679 = vmul.f32 %v673, 0.5
    %v680 = vmul.f32 %v676, 0.5
    %v681 = vmul.f32 %v673, 0.044715
    %v682 = vmul.f32 %v676, 0.044715
    %v683 = vmul.f32 %v681, %v673
    %v684 = vmul.f32 %v682, %v676
    %v685 = vmul.f32 %v683, %v673
    %v686 = vmul.f32 %v684, %v676
    %v687 = vadd.f32 %v673, %v685
    %v688 = vadd.f32 %v676, %v686
    %v689 = vmul.f32 %v687, 0.7978846
    %v690 = vmul.f32 %v688, 0.7978846
    %v691 = vtanh.pop %v689
    %v692 = vtanh.pop %v690
    %v693 = vadd.f32 %v691, 1.0
    %v694 = vadd.f32 %v692, 1.0
    %v695 = vmul.f32 %v679, %v693
    %v696 = vmul.f32 %v680, %v694
    %v697 = vld [vmem:[#allocation2 + $0x108] sm:$0xff]
    %v698 = vld [vmem:[#allocation2 + $0x110] sm:$0xff]
    %v699 = vld [vmem:[#allocation2 + $0x118] sm:$0xff]
    %v700 = vld [vmem:[#allocation2 + $0x120] sm:$0xff]
    %v701 = vld [vmem:[#allocation2 + $0x128] sm:$0xff]
    %v702 = vld [vmem:[#allocation2 + $0x130] sm:$0xff]
    %v703 = vld [vmem:[#allocation2 + $0x138] sm:$0xff]
    %v704 = vld [vmem:[#allocation2 + $0x140] sm:$0xff]
    %v705 = vld [vmem:[#allocation2 + $0x148] sm:$0xff]
    %v706 = vld [vmem:[#allocation2 + $0x150] sm:$0xff]
    %v707 = vld [vmem:[#allocation2 + $0x158] sm:$0xff]
    %v708 = vld [vmem:[#allocation2 + $0x160] sm:$0xff]
    %v709 = vld [vmem:[#allocation2 + $0x168] sm:$0xff]
    %v710 = vld [vmem:[#allocation2 + $0x170] sm:$0xff]
    %v711 = vld [vmem:[#allocation2 + $0x178] sm:$0xff]
    %v712 = vld [vmem:[#allocation2 + $0x180] sm:$0xff]
    %v713 = vpack.c.bf16 %v698, %v697
    %v714 = vpack.c.bf16 %v700, %v699
    %v715 = vpack.c.bf16 %v702, %v701
    %v716 = vpack.c.bf16 %v704, %v703
    %v717 = vpack.c.bf16 %v706, %v705
    %v718 = vpack.c.bf16 %v708, %v707
    %v719 = vpack.c.bf16 %v710, %v709
    %v720 = vpack.c.bf16 %v712, %v711
    %v721 = vpack.c.bf16 %v696, %v695
    %v722 = vld [vmem:[#allocation2 + $0x188] sm:$0x1]
    %v723 = vlaneseq
    %v724 = vshrl.u32 %v723, 7
    %v725 = vsub.s32 0, %v724
    %v726 = vrot.slane %v722, %v725
    %727 = vmatprep.subr.bf16.mxu0 0
    %728 = vmatpush1.bf16.msra.mxu0 %v720
    %729 = vmatprep.subr.bf16.mxu0 0
    %730 = vmatpush1.bf16.msra.mxu0 %v719
    %731 = vmatprep.subr.bf16.mxu0 0
    %732 = vmatpush1.bf16.msra.mxu0 %v718
    %733 = vmatprep.subr.bf16.mxu0 0
    %734 = vmatpush1.bf16.msra.mxu0 %v717
    %735 = vmatprep.subr.bf16.mxu0 0
    %736 = vmatpush1.bf16.msra.mxu0 %v716
    %737 = vmatprep.subr.bf16.mxu0 0
    %738 = vmatpush1.bf16.msra.mxu0 %v715
    %739 = vmatprep.subr.bf16.mxu0 0
    %740 = vmatpush1.bf16.msra.mxu0 %v714
    %741 = vmatprep.subr.bf16.mxu0 0
    %742 = vmatpush1.bf16.msra.mxu0 %v713
    %743 = vmatprep.subr.bf16.mxu0 0
    %744 = vmatpush2.bf16.msra.mxu0 0
    %745 = vmatprep.subr.bf16.mxu0 0
    %746 = vmatpush2.bf16.msra.mxu0 0
    %747 = vmatprep.subr.bf16.mxu0 0
    %748 = vmatpush2.bf16.msra.mxu0 0
    %749 = vmatprep.subr.bf16.mxu0 0
    %750 = vmatpush2.bf16.msra.mxu0 0
    %751 = vmatprep.subr.bf16.mxu0 0
    %752 = vmatpush2.bf16.msra.mxu0 0
    %753 = vmatprep.subr.bf16.mxu0 0
    %754 = vmatpush2.bf16.msra.mxu0 0
    %755 = vmatprep.subr.bf16.mxu0 0
    %756 = vmatpush2.bf16.msra.mxu0 0
    %757 = vmatprep.subr.bf16.mxu0 0
    %758 = vmatpush2.bf16.msra.mxu0 0
    %759 = vmatprep.mubr.bf16.mxu0 0
    %760 = vmatmul.mubr.bf16.gmra.mxu0 %v721
    %v761 = vpop.f32.mrf.mxu0
    %v762 = vadd.f32 %v726, %v761
    %v763 = vpop.f32.mrf.mxu0
    %v764 = vpop.f32.mrf.mxu0
    %v765 = vadd.f32 %v726, %v764
    %v766 = vpop.f32.mrf.mxu0
    %767 = vdwg.mxu0
    %v768 = vadd.f32 %v762, %v621
    %v769 = vadd.f32 %v765, %v622
    %v770 = vld [vmem:[#allocation2 + $0x190] sm:$0x1]
    %v771 = vld [vmem:[#allocation2 + $0x198] sm:$0x1]
    %v772 = vsel %vm36, %v768, 0.0
    %773 = vadd.xlane.f32.xlu0 %v772
    %v774 = vpop.xlane.xlu0 %773
    %v775 = vsel %vm36, %v769, 0.0
    %776 = vadd.xlane.f32.xlu0 %v775
    %v777 = vpop.xlane.xlu0 %776
    %v778 = vmul.f32 %v774, %v43
    %v779 = vmul.f32 %v777, %v43
    %v780 = vsub.f32 %v768, %v778
    %v781 = vsub.f32 %v769, %v779
    %v782 = vmul.f32 %v780, %v780
    %v783 = vmul.f32 %v781, %v781
    %v784 = vsel %vm36, %v782, 0.0
    %785 = vadd.xlane.f32.xlu0 %v784
    %v786 = vpop.xlane.xlu0 %785
    %v787 = vsel %vm36, %v783, 0.0
    %788 = vadd.xlane.f32.xlu0 %v787
    %v789 = vpop.xlane.xlu0 %788
    %v790 = vmul.f32 %v786, %v43
    %v791 = vmul.f32 %v789, %v43
    %v792 = vadd.f32 %v790, 1e-12
    %v793 = vadd.f32 %v791, 1e-12
    %v794 = vrsqrt.pop %v792
    %v795 = vrsqrt.pop %v793
    %v796 = vmul.f32 %v780, %v794
    %v797 = vmul.f32 %v781, %v795
    %v798 = vlaneseq
    %v799 = vshrl.u32 %v798, 7
    %v800 = vsub.s32 0, %v799
    %v801 = vrot.slane %v770, %v800
    %v802 = vmul.f32 %v796, %v801
    %v803 = vmul.f32 %v797, %v801
    %v804 = vlaneseq
    %v805 = vshrl.u32 %v804, 7
    %v806 = vsub.s32 0, %v805
    %v807 = vrot.slane %v771, %v806
    %v808 = vadd.f32 %v802, %v807
    %v809 = vadd.f32 %v803, %v807
    %v810 = vpack.c.bf16 %v809, %v808
    %v811 = vld [vmem:[#allocation2 + $0x1a0] sm:$0xff]
    %v812 = vld [vmem:[#allocation2 + $0x1a8] sm:$0xff]
    %v813 = vld [vmem:[#allocation2 + $0x1b0] sm:$0xff]
    %v814 = vld [vmem:[#allocation2 + $0x1b8] sm:$0xff]
    %v815 = vpack.c.bf16 %v812, %v811
    %v816 = vpack.c.bf16 %v814, %v813
    %v817 = vld [vmem:[#allocation2 + $0x1c0] sm:$0x1]
    %v818 = vlaneseq
    %v819 = vshrl.u32 %v818, 7
    %v820 = vsub.s32 0, %v819
    %v821 = vrot.slane %v817, %v820
    %v823 = vsel %vm36, %v810, 0
    %825 = vmatprep.subr.bf16.mxu0 0
    %826 = vmatpush1.bf16.msra.mxu0 0
    %827 = vmatprep.subr.bf16.mxu0 0
    %828 = vmatpush1.bf16.msra.mxu0 0
    %829 = vmatprep.subr.bf16.mxu0 0
    %830 = vmatpush1.bf16.msra.mxu0 0
    %831 = vmatprep.subr.bf16.mxu0 0
    %832 = vmatpush1.bf16.msra.mxu0 0
    %833 = vmatprep.subr.bf16.mxu0 0
    %834 = vmatpush1.bf16.msra.mxu0 0
    %835 = vmatprep.subr.bf16.mxu0 0
    %836 = vmatpush1.bf16.msra.mxu0 0
    %837 = vmatprep.subr.bf16.mxu0 0
    %838 = vmatpush1.bf16.msra.mxu0 %v816
    %839 = vmatprep.subr.bf16.mxu0 0
    %840 = vmatpush1.bf16.msra.mxu0 %v815
    %841 = vmatprep.subr.bf16.mxu0 0
    %842 = vmatpush2.bf16.msra.mxu0 0
    %843 = vmatprep.subr.bf16.mxu0 0
    %844 = vmatpush2.bf16.msra.mxu0 0
    %845 = vmatprep.subr.bf16.mxu0 0
    %846 = vmatpush2.bf16.msra.mxu0 0
    %847 = vmatprep.subr.bf16.mxu0 0
    %848 = vmatpush2.bf16.msra.mxu0 0
    %849 = vmatprep.subr.bf16.mxu0 0
    %850 = vmatpush2.bf16.msra.mxu0 0
    %851 = vmatprep.subr.bf16.mxu0 0
    %852 = vmatpush2.bf16.msra.mxu0 0
    %853 = vmatprep.subr.bf16.mxu0 0
    %854 = vmatpush2.bf16.msra.mxu0 0
    %855 = vmatprep.subr.bf16.mxu0 0
    %856 = vmatpush2.bf16.msra.mxu0 0
    %857 = vmatprep.mubr.bf16.mxu0 0
    %858 = vmatmul.mubr.bf16.gmra.mxu0 %v823
    %v859 = vpop.f32.mrf.mxu0
    %v860 = vadd.f32 %v821, %v859
    %v861 = vpop.f32.mrf.mxu0
    %v862 = vpop.f32.mrf.mxu0
    %v863 = vadd.f32 %v821, %v862
    %v864 = vpop.f32.mrf.mxu0
    %865 = vdwg.mxu0
    %v866 = vld [vmem:[#allocation2 + $0x1c8] sm:$0xff]
    %v867 = vld [vmem:[#allocation2 + $0x1d0] sm:$0xff]
    %v868 = vld [vmem:[#allocation2 + $0x1d8] sm:$0xff]
    %v869 = vld [vmem:[#allocation2 + $0x1e0] sm:$0xff]
    %v870 = vpack.c.bf16 %v867, %v866
    %v871 = vpack.c.bf16 %v869, %v868
    %v872 = vld [vmem:[#allocation2 + $0x1e8] sm:$0x1]
    %v873 = vlaneseq
    %v874 = vshrl.u32 %v873, 7
    %v875 = vsub.s32 0, %v874
    %v876 = vrot.slane %v872, %v875
    %877 = vmatprep.subr.bf16.mxu0 0
    %878 = vmatpush1.bf16.msra.mxu0 0
    %879 = vmatprep.subr.bf16.mxu0 0
    %880 = vmatpush1.bf16.msra.mxu0 0
    %881 = vmatprep.subr.bf16.mxu0 0
    %882 = vmatpush1.bf16.msra.mxu0 0
    %883 = vmatprep.subr.bf16.mxu0 0
    %884 = vmatpush1.bf16.msra.mxu0 0
    %885 = vmatprep.subr.bf16.mxu0 0
    %886 = vmatpush1.bf16.msra.mxu0 0
    %887 = vmatprep.subr.bf16.mxu0 0
    %888 = vmatpush1.bf16.msra.mxu0 0
    %889 = vmatprep.subr.bf16.mxu0 0
    %890 = vmatpush1.bf16.msra.mxu0 %v871
    %891 = vmatprep.subr.bf16.mxu0 0
    %892 = vmatpush1.bf16.msra.mxu0 %v870
    %893 = vmatprep.subr.bf16.mxu0 0
    %894 = vmatpush2.bf16.msra.mxu0 0
    %895 = vmatprep.subr.bf16.mxu0 0
    %896 = vmatpush2.bf16.msra.mxu0 0
    %897 = vmatprep.subr.bf16.mxu0 0
    %898 = vmatpush2.bf16.msra.mxu0 0
    %899 = vmatprep.subr.bf16.mxu0 0
    %900 = vmatpush2.bf16.msra.mxu0 0
    %901 = vmatprep.subr.bf16.mxu0 0
    %902 = vmatpush2.bf16.msra.mxu0 0
    %903 = vmatprep.subr.bf16.mxu0 0
    %904 = vmatpush2.bf16.msra.mxu0 0
    %905 = vmatprep.subr.bf16.mxu0 0
    %906 = vmatpush2.bf16.msra.mxu0 0
    %907 = vmatprep.subr.bf16.mxu0 0
    %908 = vmatpush2.bf16.msra.mxu0 0
    %909 = vmatprep.mubr.bf16.mxu0 0
    %910 = vmatmul.mubr.bf16.gmra.mxu0 %v823
    %v911 = vpop.f32.mrf.mxu0
    %v912 = vadd.f32 %v876, %v911
    %v913 = vpop.f32.mrf.mxu0
    %v914 = vpop.f32.mrf.mxu0
    %v915 = vadd.f32 %v876, %v914
    %v916 = vpop.f32.mrf.mxu0
    %917 = vdwg.mxu0
    %v918 = vld [vmem:[#allocation2 + $0x1f0] sm:$0xff]
    %v919 = vld [vmem:[#allocation2 + $0x1f8] sm:$0xff]
    %v920 = vld [vmem:[#allocation2 + $0x200] sm:$0xff]
    %v921 = vld [vmem:[#allocation2 + $0x208] sm:$0xff]
    %v922 = vpack.c.bf16 %v919, %v918
    %v923 = vpack.c.bf16 %v921, %v920
    %v924 = vld [vmem:[#allocation2 + $0x210] sm:$0x1]
    %v925 = vlaneseq
    %v926 = vshrl.u32 %v925, 7
    %v927 = vsub.s32 0, %v926
    %v928 = vrot.slane %v924, %v927
    %929 = vmatprep.subr.bf16.mxu0 0
    %930 = vmatpush1.bf16.msra.mxu0 0
    %931 = vmatprep.subr.bf16.mxu0 0
    %932 = vmatpush1.bf16.msra.mxu0 0
    %933 = vmatprep.subr.bf16.mxu0 0
    %934 = vmatpush1.bf16.msra.mxu0 0
    %935 = vmatprep.subr.bf16.mxu0 0
    %936 = vmatpush1.bf16.msra.mxu0 0
    %937 = vmatprep.subr.bf16.mxu0 0
    %938 = vmatpush1.bf16.msra.mxu0 0
    %939 = vmatprep.subr.bf16.mxu0 0
    %940 = vmatpush1.bf16.msra.mxu0 0
    %941 = vmatprep.subr.bf16.mxu0 0
    %942 = vmatpush1.bf16.msra.mxu0 %v923
    %943 = vmatprep.subr.bf16.mxu0 0
    %944 = vmatpush1.bf16.msra.mxu0 %v922
    %945 = vmatprep.subr.bf16.mxu0 0
    %946 = vmatpush2.bf16.msra.mxu0 0
    %947 = vmatprep.subr.bf16.mxu0 0
    %948 = vmatpush2.bf16.msra.mxu0 0
    %949 = vmatprep.subr.bf16.mxu0 0
    %950 = vmatpush2.bf16.msra.mxu0 0
    %951 = vmatprep.subr.bf16.mxu0 0
    %952 = vmatpush2.bf16.msra.mxu0 0
    %953 = vmatprep.subr.bf16.mxu0 0
    %954 = vmatpush2.bf16.msra.mxu0 0
    %955 = vmatprep.subr.bf16.mxu0 0
    %956 = vmatpush2.bf16.msra.mxu0 0
    %957 = vmatprep.subr.bf16.mxu0 0
    %958 = vmatpush2.bf16.msra.mxu0 0
    %959 = vmatprep.subr.bf16.mxu0 0
    %960 = vmatpush2.bf16.msra.mxu0 0
    %961 = vmatprep.mubr.bf16.mxu0 0
    %962 = vmatmul.mubr.bf16.gmra.mxu0 %v823
    %v963 = vpop.f32.mrf.mxu0
    %v964 = vadd.f32 %v928, %v963
    %v965 = vpop.f32.mrf.mxu0
    %v966 = vpop.f32.mrf.mxu0
    %v967 = vadd.f32 %v928, %v966
    %v968 = vpop.f32.mrf.mxu0
    %969 = vdwg.mxu0
    %v970 = vpack.c.bf16 %v863, %v860
    %v971 = vpack.c.bf16 %v915, %v912
    %v972 = vpack.c.bf16 %v967, %v964
    %v974 = vsel %vm239, %v970, 0
    %v977 = vsel %vm239, %v971, 0
    %979 = vmatprep.subr.bf16.mxu0 0
    %980 = vmatpush1.bf16.xpose.msra.mxu0 0
    %981 = vmatprep.subr.bf16.mxu0 0
    %982 = vmatpush1.bf16.xpose.msra.mxu0 0
    %983 = vmatprep.subr.bf16.mxu0 0
    %984 = vmatpush1.bf16.xpose.msra.mxu0 0
    %985 = vmatprep.subr.bf16.mxu0 0
    %986 = vmatpush1.bf16.xpose.msra.mxu0 0
    %987 = vmatprep.subr.bf16.mxu0 0
    %988 = vmatpush1.bf16.xpose.msra.mxu0 0
    %989 = vmatprep.subr.bf16.mxu0 0
    %990 = vmatpush1.bf16.xpose.msra.mxu0 0
    %991 = vmatprep.subr.bf16.mxu0 0
    %992 = vmatpush1.bf16.xpose.msra.mxu0 0
    %993 = vmatprep.subr.bf16.mxu0 0
    %994 = vmatpush1.bf16.xpose.msra.mxu0 %v977
    %995 = vmatprep.subr.bf16.mxu0 0
    %996 = vmatpush2.bf16.xpose.msra.mxu0 0
    %997 = vmatprep.subr.bf16.mxu0 0
    %998 = vmatpush2.bf16.xpose.msra.mxu0 0
    %999 = vmatprep.subr.bf16.mxu0 0
    %1000 = vmatpush2.bf16.xpose.msra.mxu0 0
    %1001 = vmatprep.subr.bf16.mxu0 0
    %1002 = vmatpush2.bf16.xpose.msra.mxu0 0
    %1003 = vmatprep.subr.bf16.mxu0 0
    %1004 = vmatpush2.bf16.xpose.msra.mxu0 0
    %1005 = vmatprep.subr.bf16.mxu0 0
    %1006 = vmatpush2.bf16.xpose.msra.mxu0 0
    %1007 = vmatprep.subr.bf16.mxu0 0
    %1008 = vmatpush2.bf16.xpose.msra.mxu0 0
    %1009 = vmatprep.subr.bf16.mxu0 0
    %1010 = vmatpush2.bf16.xpose.msra.mxu0 0
    %1011 = vmatprep.mubr.bf16.mxu0 0
    %1012 = vmatmul.mubr.bf16.gmra.mxu0 %v974
    %v1013 = vpop.f32.mrf.mxu0
    %v1014 = vadd.f32 %v26, %v1013
    %v1015 = vpop.f32.mrf.mxu0
    %v1016 = vpop.f32.mrf.mxu0
    %v1017 = vadd.f32 %v27, %v1016
    %v1018 = vpop.f32.mrf.mxu0
    %1019 = vdwg.mxu0
    %v1020 = vsel %vm239, %v1014, -inf
    %1021 = vmax.xlane.f32.xlu0 %v1020
    %v1022 = vpop.xlane.xlu0 %1021
    %v1023 = vsel %vm239, %v1017, -inf
    %1024 = vmax.xlane.f32.xlu0 %v1023
    %v1025 = vpop.xlane.xlu0 %1024
    %v1026 = vsub.f32 %v1014, %v1022
    %v1027 = vsub.f32 %v1017, %v1025
    %v1028 = vmul.f32 %v1026, 1.442695
    %v1029 = vpow.pop %v1028
    %v1030 = vmul.f32 %v1027, 1.442695
    %v1031 = vpow.pop %v1030
    %v1032 = vsel %vm239, %v1029, 0.0
    %1033 = vadd.xlane.f32.xlu0 %v1032
    %v1034 = vpop.xlane.xlu0 %1033
    %v1035 = vsel %vm239, %v1031, 0.0
    %1036 = vadd.xlane.f32.xlu0 %v1035
    %v1037 = vpop.xlane.xlu0 %1036
    %v1038 = vrcp.pop %v1034
    %v1039 = vrcp.pop %v1037
    %v1040 = vmul.f32 %v1029, %v1038
    %v1041 = vmul.f32 %v1031, %v1039
    %v1042 = vpack.c.bf16 %v1041, %v1040
    %v1044 = vsel %vm239, %v1042, 0
    %1046 = vmatprep.subr.bf16.mxu0 0
    %1047 = vmatpush1.bf16.msra.mxu0 0
    %1048 = vmatprep.subr.bf16.mxu0 0
    %1049 = vmatpush1.bf16.msra.mxu0 0
    %1050 = vmatprep.subr.bf16.mxu0 0
    %1051 = vmatpush1.bf16.msra.mxu0 0
    %1052 = vmatprep.subr.bf16.mxu0 0
    %1053 = vmatpush1.bf16.msra.mxu0 0
    %1054 = vmatprep.subr.bf16.mxu0 0
    %1055 = vmatpush1.bf16.msra.mxu0 0
    %1056 = vmatprep.subr.bf16.mxu0 0
    %1057 = vmatpush1.bf16.msra.mxu0 0
    %1058 = vmatprep.subr.bf16.mxu0 0
    %1059 = vmatpush1.bf16.msra.mxu0 0
    %1060 = vmatprep.subr.bf16.mxu0 0
    %1061 = vmatpush1.bf16.msra.mxu0 %v972
    %1062 = vmatprep.subr.bf16.mxu0 0
    %1063 = vmatpush2.bf16.msra.mxu0 0
    %1064 = vmatprep.subr.bf16.mxu0 0
    %1065 = vmatpush2.bf16.msra.mxu0 0
    %1066 = vmatprep.subr.bf16.mxu0 0
    %1067 = vmatpush2.bf16.msra.mxu0 0
    %1068 = vmatprep.subr.bf16.mxu0 0
    %1069 = vmatpush2.bf16.msra.mxu0 0
    %1070 = vmatprep.subr.bf16.mxu0 0
    %1071 = vmatpush2.bf16.msra.mxu0 0
    %1072 = vmatprep.subr.bf16.mxu0 0
    %1073 = vmatpush2.bf16.msra.mxu0 0
    %1074 = vmatprep.subr.bf16.mxu0 0
    %1075 = vmatpush2.bf16.msra.mxu0 0
    %1076 = vmatprep.subr.bf16.mxu0 0
    %1077 = vmatpush2.bf16.msra.mxu0 0
    %1078 = vmatprep.mubr.bf16.mxu0 0
    %1079 = vmatmul.mubr.bf16.gmra.mxu0 %v1044
    %v1080 = vpop.f32.mrf.mxu0
    %v1081 = vadd.f32 0.0, %v1080
    %v1082 = vpop.f32.mrf.mxu0
    %v1083 = vpop.f32.mrf.mxu0
    %v1084 = vadd.f32 0.0, %v1083
    %v1085 = vpop.f32.mrf.mxu0
    %1086 = vdwg.mxu0
    %v1087 = vld [vmem:[#allocation2 + $0x218] sm:$0xff]
    %v1088 = vld [vmem:[#allocation2 + $0x220] sm:$0xff]
    %v1089 = vpack.c.bf16 %v1088, %v1087
    %v1090 = vpack.c.bf16 %v1084, %v1081
    %1092 = vrot.lane.b32.xlu0 %v970, 112
    %v1093 = vpop.permute.xlu0 %1092
    %1095 = vrot.lane.b32.xlu0 %v971, 112
    %v1096 = vpop.permute.xlu0 %1095
    %v1098 = vsel %vm239, %v1093, 0
    %v1101 = vsel %vm239, %v1096, 0
    %1103 = vmatprep.subr.bf16.mxu0 0
    %1104 = vmatpush1.bf16.xpose.msra.mxu0 0
    %1105 = vmatprep.subr.bf16.mxu0 0
    %1106 = vmatpush1.bf16.xpose.msra.mxu0 0
    %1107 = vmatprep.subr.bf16.mxu0 0
    %1108 = vmatpush1.bf16.xpose.msra.mxu0 0
    %1109 = vmatprep.subr.bf16.mxu0 0
    %1110 = vmatpush1.bf16.xpose.msra.mxu0 0
    %1111 = vmatprep.subr.bf16.mxu0 0
    %1112 = vmatpush1.bf16.xpose.msra.mxu0 0
    %1113 = vmatprep.subr.bf16.mxu0 0
    %1114 = vmatpush1.bf16.xpose.msra.mxu0 0
    %1115 = vmatprep.subr.bf16.mxu0 0
    %1116 = vmatpush1.bf16.xpose.msra.mxu0 0
    %1117 = vmatprep.subr.bf16.mxu0 0
    %1118 = vmatpush1.bf16.xpose.msra.mxu0 %v1101
    %1119 = vmatprep.subr.bf16.mxu0 0
    %1120 = vmatpush2.bf16.xpose.msra.mxu0 0
    %1121 = vmatprep.subr.bf16.mxu0 0
    %1122 = vmatpush2.bf16.xpose.msra.mxu0 0
    %1123 = vmatprep.subr.bf16.mxu0 0
    %1124 = vmatpush2.bf16.xpose.msra.mxu0 0
    %1125 = vmatprep.subr.bf16.mxu0 0
    %1126 = vmatpush2.bf16.xpose.msra.mxu0 0
    %1127 = vmatprep.subr.bf16.mxu0 0
    %1128 = vmatpush2.bf16.xpose.msra.mxu0 0
    %1129 = vmatprep.subr.bf16.mxu0 0
    %1130 = vmatpush2.bf16.xpose.msra.mxu0 0
    %1131 = vmatprep.subr.bf16.mxu0 0
    %1132 = vmatpush2.bf16.xpose.msra.mxu0 0
    %1133 = vmatprep.subr.bf16.mxu0 0
    %1134 = vmatpush2.bf16.xpose.msra.mxu0 0
    %1135 = vmatprep.mubr.bf16.mxu0 0
    %1136 = vmatmul.mubr.bf16.gmra.mxu0 %v1098
    %v1137 = vpop.f32.mrf.mxu0
    %v1138 = vadd.f32 %v26, %v1137
    %v1139 = vpop.f32.mrf.mxu0
    %v1140 = vpop.f32.mrf.mxu0
    %v1141 = vadd.f32 %v27, %v1140
    %v1142 = vpop.f32.mrf.mxu0
    %1143 = vdwg.mxu0
    %v1144 = vsel %vm239, %v1138, -inf
    %1145 = vmax.xlane.f32.xlu0 %v1144
    %v1146 = vpop.xlane.xlu0 %1145
    %v1147 = vsel %vm239, %v1141, -inf
    %1148 = vmax.xlane.f32.xlu0 %v1147
    %v1149 = vpop.xlane.xlu0 %1148
    %v1150 = vsub.f32 %v1138, %v1146
    %v1151 = vsub.f32 %v1141, %v1149
    %v1152 = vmul.f32 %v1150, 1.442695
    %v1153 = vpow.pop %v1152
    %v1154 = vmul.f32 %v1151, 1.442695
    %v1155 = vpow.pop %v1154
    %v1156 = vsel %vm239, %v1153, 0.0
    %1157 = vadd.xlane.f32.xlu0 %v1156
    %v1158 = vpop.xlane.xlu0 %1157
    %v1159 = vsel %vm239, %v1155, 0.0
    %1160 = vadd.xlane.f32.xlu0 %v1159
    %v1161 = vpop.xlane.xlu0 %1160
    %v1162 = vrcp.pop %v1158
    %v1163 = vrcp.pop %v1161
    %v1164 = vmul.f32 %v1153, %v1162
    %v1165 = vmul.f32 %v1155, %v1163
    %v1166 = vpack.c.bf16 %v1165, %v1164
    %1168 = vrot.lane.b32.xlu0 %v972, 112
    %v1169 = vpop.permute.xlu0 %1168
    %v1172 = vsel %vm239, %v1166, 0
    %1174 = vmatprep.subr.bf16.mxu0 0
    %1175 = vmatpush1.bf16.msra.mxu0 0
    %1176 = vmatprep.subr.bf16.mxu0 0
    %1177 = vmatpush1.bf16.msra.mxu0 0
    %1178 = vmatprep.subr.bf16.mxu0 0
    %1179 = vmatpush1.bf16.msra.mxu0 0
    %1180 = vmatprep.subr.bf16.mxu0 0
    %1181 = vmatpush1.bf16.msra.mxu0 0
    %1182 = vmatprep.subr.bf16.mxu0 0
    %1183 = vmatpush1.bf16.msra.mxu0 0
    %1184 = vmatprep.subr.bf16.mxu0 0
    %1185 = vmatpush1.bf16.msra.mxu0 0
    %1186 = vmatprep.subr.bf16.mxu0 0
    %1187 = vmatpush1.bf16.msra.mxu0 0
    %1188 = vmatprep.subr.bf16.mxu0 0
    %1189 = vmatpush1.bf16.msra.mxu0 %v1169
    %1190 = vmatprep.subr.bf16.mxu0 0
    %1191 = vmatpush2.bf16.msra.mxu0 0
    %1192 = vmatprep.subr.bf16.mxu0 0
    %1193 = vmatpush2.bf16.msra.mxu0 0
    %1194 = vmatprep.subr.bf16.mxu0 0
    %1195 = vmatpush2.bf16.msra.mxu0 0
    %1196 = vmatprep.subr.bf16.mxu0 0
    %1197 = vmatpush2.bf16.msra.mxu0 0
    %1198 = vmatprep.subr.bf16.mxu0 0
    %1199 = vmatpush2.bf16.msra.mxu0 0
    %1200 = vmatprep.subr.bf16.mxu0 0
    %1201 = vmatpush2.bf16.msra.mxu0 0
    %1202 = vmatprep.subr.bf16.mxu0 0
    %1203 = vmatpush2.bf16.msra.mxu0 0
    %1204 = vmatprep.subr.bf16.mxu0 0
    %1205 = vmatpush2.bf16.msra.mxu0 0
    %1206 = vmatprep.mubr.bf16.mxu0 0
    %1207 = vmatmul.mubr.bf16.gmra.mxu0 %v1172
    %v1208 = vpop.f32.mrf.mxu0
    %v1209 = vadd.f32 0.0, %v1208
    %v1210 = vpop.f32.mrf.mxu0
    %v1211 = vpop.f32.mrf.mxu0
    %v1212 = vadd.f32 0.0, %v1211
    %v1213 = vpop.f32.mrf.mxu0
    %1214 = vdwg.mxu0
    %v1215 = vld [vmem:[#allocation2 + $0x228] sm:$0xff]
    %v1216 = vld [vmem:[#allocation2 + $0x230] sm:$0xff]
    %v1217 = vpack.c.bf16 %v1216, %v1215
    %v1218 = vpack.c.bf16 %v1212, %v1209
    %v1220 = vsel %vm239, %v1218, 0
    %1222 = vmatprep.subr.bf16.mxu0 0
    %1223 = vmatpush1.bf16.msra.mxu0 0
    %1224 = vmatprep.subr.bf16.mxu0 0
    %1225 = vmatpush1.bf16.msra.mxu0 0
    %1226 = vmatprep.subr.bf16.mxu0 0
    %1227 = vmatpush1.bf16.msra.mxu0 0
    %1228 = vmatprep.subr.bf16.mxu0 0
    %1229 = vmatpush1.bf16.msra.mxu0 0
    %1230 = vmatprep.subr.bf16.mxu0 0
    %1231 = vmatpush1.bf16.msra.mxu0 0
    %1232 = vmatprep.subr.bf16.mxu0 0
    %1233 = vmatpush1.bf16.msra.mxu0 0
    %1234 = vmatprep.subr.bf16.mxu0 0
    %1235 = vmatpush1.bf16.msra.mxu0 0
    %1236 = vmatprep.subr.bf16.mxu0 0
    %1237 = vmatpush1.bf16.msra.mxu0 %v1217
    %1238 = vmatprep.subr.bf16.mxu0 0
    %1239 = vmatpush2.bf16.msra.mxu0 0
    %1240 = vmatprep.subr.bf16.mxu0 0
    %1241 = vmatpush2.bf16.msra.mxu0 0
    %1242 = vmatprep.subr.bf16.mxu0 0
    %1243 = vmatpush2.bf16.msra.mxu0 0
    %1244 = vmatprep.subr.bf16.mxu0 0
    %1245 = vmatpush2.bf16.msra.mxu0 0
    %1246 = vmatprep.subr.bf16.mxu0 0
    %1247 = vmatpush2.bf16.msra.mxu0 0
    %1248 = vmatprep.subr.bf16.mxu0 0
    %1249 = vmatpush2.bf16.msra.mxu0 0
    %1250 = vmatprep.subr.bf16.mxu0 0
    %1251 = vmatpush2.bf16.msra.mxu0 0
    %1252 = vmatprep.subr.bf16.mxu0 0
    %1253 = vmatpush2.bf16.msra.mxu0 0
    %1254 = vmatprep.mubr.bf16.mxu0 0
    %1255 = vmatmul.mubr.bf16.gmra.mxu0 %v1220
    %v1256 = vpop.f32.mrf.mxu0
    %v1257 = vadd.f32 0.0, %v1256
    %v1258 = vpop.f32.mrf.mxu0
    %v1259 = vpop.f32.mrf.mxu0
    %v1260 = vadd.f32 0.0, %v1259
    %v1261 = vpop.f32.mrf.mxu0
    %1262 = vdwg.mxu0
    %v1264 = vsel %vm239, %v1090, 0
    %1266 = vmatprep.subr.bf16.mxu0 0
    %1267 = vmatpush1.bf16.msra.mxu0 0
    %1268 = vmatprep.subr.bf16.mxu0 0
    %1269 = vmatpush1.bf16.msra.mxu0 0
    %1270 = vmatprep.subr.bf16.mxu0 0
    %1271 = vmatpush1.bf16.msra.mxu0 0
    %1272 = vmatprep.subr.bf16.mxu0 0
    %1273 = vmatpush1.bf16.msra.mxu0 0
    %1274 = vmatprep.subr.bf16.mxu0 0
    %1275 = vmatpush1.bf16.msra.mxu0 0
    %1276 = vmatprep.subr.bf16.mxu0 0
    %1277 = vmatpush1.bf16.msra.mxu0 0
    %1278 = vmatprep.subr.bf16.mxu0 0
    %1279 = vmatpush1.bf16.msra.mxu0 0
    %1280 = vmatprep.subr.bf16.mxu0 0
    %1281 = vmatpush1.bf16.msra.mxu0 %v1089
    %1282 = vmatprep.subr.bf16.mxu0 0
    %1283 = vmatpush2.bf16.msra.mxu0 0
    %1284 = vmatprep.subr.bf16.mxu0 0
    %1285 = vmatpush2.bf16.msra.mxu0 0
    %1286 = vmatprep.subr.bf16.mxu0 0
    %1287 = vmatpush2.bf16.msra.mxu0 0
    %1288 = vmatprep.subr.bf16.mxu0 0
    %1289 = vmatpush2.bf16.msra.mxu0 0
    %1290 = vmatprep.subr.bf16.mxu0 0
    %1291 = vmatpush2.bf16.msra.mxu0 0
    %1292 = vmatprep.subr.bf16.mxu0 0
    %1293 = vmatpush2.bf16.msra.mxu0 0
    %1294 = vmatprep.subr.bf16.mxu0 0
    %1295 = vmatpush2.bf16.msra.mxu0 0
    %1296 = vmatprep.subr.bf16.mxu0 0
    %1297 = vmatpush2.bf16.msra.mxu0 0
    %1298 = vmatprep.mubr.bf16.mxu0 0
    %1299 = vmatmul.mubr.bf16.gmra.mxu0 %v1264
    %v1300 = vpop.f32.mrf.mxu0
    %v1301 = vadd.f32 %v1257, %v1300
    %v1302 = vpop.f32.mrf.mxu0
    %v1303 = vpop.f32.mrf.mxu0
    %v1304 = vadd.f32 %v1260, %v1303
    %v1305 = vpop.f32.mrf.mxu0
    %1306 = vdwg.mxu0
    %v1307 = vld [vmem:[#allocation2 + $0x238] sm:$0x1]
    %v1308 = vlaneseq
    %v1309 = vshrl.u32 %v1308, 7
    %v1310 = vsub.s32 0, %v1309
    %v1311 = vrot.slane %v1307, %v1310
    %v1312 = vadd.f32 %v1301, %v1311
    %v1313 = vadd.f32 %v1304, %v1311
    %v1314 = vadd.f32 %v1312, %v808
    %v1315 = vadd.f32 %v1313, %v809
    %v1316 = vld [vmem:[#allocation2 + $0x240] sm:$0x1]
    %v1317 = vld [vmem:[#allocation2 + $0x248] sm:$0x1]
    %v1318 = vsel %vm36, %v1314, 0.0
    %1319 = vadd.xlane.f32.xlu0 %v1318
    %v1320 = vpop.xlane.xlu0 %1319
    %v1321 = vsel %vm36, %v1315, 0.0
    %1322 = vadd.xlane.f32.xlu0 %v1321
    %v1323 = vpop.xlane.xlu0 %1322
    %v1324 = vmul.f32 %v1320, %v43
    %v1325 = vmul.f32 %v1323, %v43
    %v1326 = vsub.f32 %v1314, %v1324
    %v1327 = vsub.f32 %v1315, %v1325
    %v1328 = vmul.f32 %v1326, %v1326
    %v1329 = vmul.f32 %v1327, %v1327
    %v1330 = vsel %vm36, %v1328, 0.0
    %1331 = vadd.xlane.f32.xlu0 %v1330
    %v1332 = vpop.xlane.xlu0 %1331
    %v1333 = vsel %vm36, %v1329, 0.0
    %1334 = vadd.xlane.f32.xlu0 %v1333
    %v1335 = vpop.xlane.xlu0 %1334
    %v1336 = vmul.f32 %v1332, %v43
    %v1337 = vmul.f32 %v1335, %v43
    %v1338 = vadd.f32 %v1336, 1e-12
    %v1339 = vadd.f32 %v1337, 1e-12
    %v1340 = vrsqrt.pop %v1338
    %v1341 = vrsqrt.pop %v1339
    %v1342 = vmul.f32 %v1326, %v1340
    %v1343 = vmul.f32 %v1327, %v1341
    %v1344 = vlaneseq
    %v1345 = vshrl.u32 %v1344, 7
    %v1346 = vsub.s32 0, %v1345
    %v1347 = vrot.slane %v1316, %v1346
    %v1348 = vmul.f32 %v1342, %v1347
    %v1349 = vmul.f32 %v1343, %v1347
    %v1350 = vlaneseq
    %v1351 = vshrl.u32 %v1350, 7
    %v1352 = vsub.s32 0, %v1351
    %v1353 = vrot.slane %v1317, %v1352
    %v1354 = vadd.f32 %v1348, %v1353
    %v1355 = vadd.f32 %v1349, %v1353
    %v1356 = vld [vmem:[#allocation2 + $0x250] sm:$0xff]
    %v1357 = vld [vmem:[#allocation2 + $0x258] sm:$0xff]
    %v1358 = vld [vmem:[#allocation2 + $0x260] sm:$0xff]
    %v1359 = vld [vmem:[#allocation2 + $0x268] sm:$0xff]
    %v1360 = vpack.c.bf16 %v1357, %v1356
    %v1361 = vpack.c.bf16 %v1359, %v1358
    %v1362 = vpack.c.bf16 %v1355, %v1354
    %v1363 = vld [vmem:[#allocation2 + $0x270] sm:$0x1]
    %v1364 = vlaneseq
    %v1365 = vshrl.u32 %v1364, 7
    %v1366 = vsub.s32 0, %v1365
    %v1367 = vrot.slane %v1363, %v1366
    %v1369 = vsel %vm36, %v1362, 0
    %1371 = vmatprep.subr.bf16.mxu0 0
    %1372 = vmatpush1.bf16.msra.mxu0 0
    %1373 = vmatprep.subr.bf16.mxu0 0
    %1374 = vmatpush1.bf16.msra.mxu0 0
    %1375 = vmatprep.subr.bf16.mxu0 0
    %1376 = vmatpush1.bf16.msra.mxu0 0
    %1377 = vmatprep.subr.bf16.mxu0 0
    %1378 = vmatpush1.bf16.msra.mxu0 0
    %1379 = vmatprep.subr.bf16.mxu0 0
    %1380 = vmatpush1.bf16.msra.mxu0 0
    %1381 = vmatprep.subr.bf16.mxu0 0
    %1382 = vmatpush1.bf16.msra.mxu0 0
    %1383 = vmatprep.subr.bf16.mxu0 0
    %1384 = vmatpush1.bf16.msra.mxu0 %v1361
    %1385 = vmatprep.subr.bf16.mxu0 0
    %1386 = vmatpush1.bf16.msra.mxu0 %v1360
    %1387 = vmatprep.subr.bf16.mxu0 0
    %1388 = vmatpush2.bf16.msra.mxu0 0
    %1389 = vmatprep.subr.bf16.mxu0 0
    %1390 = vmatpush2.bf16.msra.mxu0 0
    %1391 = vmatprep.subr.bf16.mxu0 0
    %1392 = vmatpush2.bf16.msra.mxu0 0
    %1393 = vmatprep.subr.bf16.mxu0 0
    %1394 = vmatpush2.bf16.msra.mxu0 0
    %1395 = vmatprep.subr.bf16.mxu0 0
    %1396 = vmatpush2.bf16.msra.mxu0 0
    %1397 = vmatprep.subr.bf16.mxu0 0
    %1398 = vmatpush2.bf16.msra.mxu0 0
    %1399 = vmatprep.subr.bf16.mxu0 0
    %1400 = vmatpush2.bf16.msra.mxu0 0
    %1401 = vmatprep.subr.bf16.mxu0 0
    %1402 = vmatpush2.bf16.msra.mxu0 0
    %1403 = vmatprep.mubr.bf16.mxu0 0
    %1404 = vmatmul.mubr.bf16.gmra.mxu0 %v1369
    %v1405 = vpop.f32.mrf.mxu0
    %v1406 = vadd.f32 %v1367, %v1405
    %v1407 = vpop.f32.mrf.mxu0
    %v1408 = vpop.f32.mrf.mxu0
    %v1409 = vadd.f32 %v1367, %v1408
    %v1410 = vpop.f32.mrf.mxu0
    %1411 = vdwg.mxu0
    %v1412 = vmul.f32 %v1406, 0.5
    %v1413 = vmul.f32 %v1409, 0.5
    %v1414 = vmul.f32 %v1406, 0.044715
    %v1415 = vmul.f32 %v1409, 0.044715
    %v1416 = vmul.f32 %v1414, %v1406
    %v1417 = vmul.f32 %v1415, %v1409
    %v1418 = vmul.f32 %v1416, %v1406
    %v1419 = vmul.f32 %v1417, %v1409
    %v1420 = vadd.f32 %v1406, %v1418
    %v1421 = vadd.f32 %v1409, %v1419
    %v1422 = vmul.f32 %v1420, 0.7978846
    %v1423 = vmul.f32 %v1421, 0.7978846
    %v1424 = vtanh.pop %v1422
    %v1425 = vtanh.pop %v1423
    %v1426 = vadd.f32 %v1424, 1.0
    %v1427 = vadd.f32 %v1425, 1.0
    %v1428 = vmul.f32 %v1412, %v1426
    %v1429 = vmul.f32 %v1413, %v1427
    %v1430 = vld [vmem:[#allocation2 + $0x278] sm:$0xff]
    %v1431 = vld [vmem:[#allocation2 + $0x280] sm:$0xff]
    %v1432 = vld [vmem:[#allocation2 + $0x288] sm:$0xff]
    %v1433 = vld [vmem:[#allocation2 + $0x290] sm:$0xff]
    %v1434 = vld [vmem:[#allocation2 + $0x298] sm:$0xff]
    %v1435 = vld [vmem:[#allocation2 + $0x2a0] sm:$0xff]
    %v1436 = vld [vmem:[#allocation2 + $0x2a8] sm:$0xff]
    %v1437 = vld [vmem:[#allocation2 + $0x2b0] sm:$0xff]
    %v1438 = vld [vmem:[#allocation2 + $0x2b8] sm:$0xff]
    %v1439 = vld [vmem:[#allocation2 + $0x2c0] sm:$0xff]
    %v1440 = vld [vmem:[#allocation2 + $0x2c8] sm:$0xff]
    %v1441 = vld [vmem:[#allocation2 + $0x2d0] sm:$0xff]
    %v1442 = vld [vmem:[#allocation2 + $0x2d8] sm:$0xff]
    %v1443 = vld [vmem:[#allocation2 + $0x2e0] sm:$0xff]
    %v1444 = vld [vmem:[#allocation2 + $0x2e8] sm:$0xff]
    %v1445 = vld [vmem:[#allocation2 + $0x2f0] sm:$0xff]
    %v1446 = vpack.c.bf16 %v1431, %v1430
    %v1447 = vpack.c.bf16 %v1433, %v1432
    %v1448 = vpack.c.bf16 %v1435, %v1434
    %v1449 = vpack.c.bf16 %v1437, %v1436
    %v1450 = vpack.c.bf16 %v1439, %v1438
    %v1451 = vpack.c.bf16 %v1441, %v1440
    %v1452 = vpack.c.bf16 %v1443, %v1442
    %v1453 = vpack.c.bf16 %v1445, %v1444
    %v1454 = vpack.c.bf16 %v1429, %v1428
    %v1455 = vld [vmem:[#allocation2 + $0x2f8] sm:$0x1]
    %v1456 = vlaneseq
    %v1457 = vshrl.u32 %v1456, 7
    %v1458 = vsub.s32 0, %v1457
    %v1459 = vrot.slane %v1455, %v1458
    %1460 = vmatprep.subr.bf16.mxu0 0
    %1461 = vmatpush1.bf16.msra.mxu0 %v1453
    %1462 = vmatprep.subr.bf16.mxu0 0
    %1463 = vmatpush1.bf16.msra.mxu0 %v1452
    %1464 = vmatprep.subr.bf16.mxu0 0
    %1465 = vmatpush1.bf16.msra.mxu0 %v1451
    %1466 = vmatprep.subr.bf16.mxu0 0
    %1467 = vmatpush1.bf16.msra.mxu0 %v1450
    %1468 = vmatprep.subr.bf16.mxu0 0
    %1469 = vmatpush1.bf16.msra.mxu0 %v1449
    %1470 = vmatprep.subr.bf16.mxu0 0
    %1471 = vmatpush1.bf16.msra.mxu0 %v1448
    %1472 = vmatprep.subr.bf16.mxu0 0
    %1473 = vmatpush1.bf16.msra.mxu0 %v1447
    %1474 = vmatprep.subr.bf16.mxu0 0
    %1475 = vmatpush1.bf16.msra.mxu0 %v1446
    %1476 = vmatprep.subr.bf16.mxu0 0
    %1477 = vmatpush2.bf16.msra.mxu0 0
    %1478 = vmatprep.subr.bf16.mxu0 0
    %1479 = vmatpush2.bf16.msra.mxu0 0
    %1480 = vmatprep.subr.bf16.mxu0 0
    %1481 = vmatpush2.bf16.msra.mxu0 0
    %1482 = vmatprep.subr.bf16.mxu0 0
    %1483 = vmatpush2.bf16.msra.mxu0 0
    %1484 = vmatprep.subr.bf16.mxu0 0
    %1485 = vmatpush2.bf16.msra.mxu0 0
    %1486 = vmatprep.subr.bf16.mxu0 0
    %1487 = vmatpush2.bf16.msra.mxu0 0
    %1488 = vmatprep.subr.bf16.mxu0 0
    %1489 = vmatpush2.bf16.msra.mxu0 0
    %1490 = vmatprep.subr.bf16.mxu0 0
    %1491 = vmatpush2.bf16.msra.mxu0 0
    %1492 = vmatprep.mubr.bf16.mxu0 0
    %1493 = vmatmul.mubr.bf16.gmra.mxu0 %v1454
    %v1494 = vpop.f32.mrf.mxu0
    %v1495 = vadd.f32 %v1459, %v1494
    %v1496 = vpop.f32.mrf.mxu0
    %v1497 = vpop.f32.mrf.mxu0
    %v1498 = vadd.f32 %v1459, %v1497
    %v1499 = vpop.f32.mrf.mxu0
    %1500 = vdwg.mxu0
    %v1501 = vadd.f32 %v1495, %v1354
    %v1502 = vadd.f32 %v1498, %v1355
    %v1503 = vld [vmem:[#allocation2 + $0x300] sm:$0x1]
    %v1504 = vld [vmem:[#allocation2 + $0x308] sm:$0x1]
    %v1505 = vsel %vm36, %v1501, 0.0
    %1506 = vadd.xlane.f32.xlu0 %v1505
    %v1507 = vpop.xlane.xlu0 %1506
    %v1508 = vsel %vm36, %v1502, 0.0
    %1509 = vadd.xlane.f32.xlu0 %v1508
    %v1510 = vpop.xlane.xlu0 %1509
    %v1511 = vmul.f32 %v1507, %v43
    %v1512 = vmul.f32 %v1510, %v43
    %v1513 = vsub.f32 %v1501, %v1511
    %v1514 = vsub.f32 %v1502, %v1512
    %v1515 = vmul.f32 %v1513, %v1513
    %v1516 = vmul.f32 %v1514, %v1514
    %v1517 = vsel %vm36, %v1515, 0.0
    %1518 = vadd.xlane.f32.xlu0 %v1517
    %v1519 = vpop.xlane.xlu0 %1518
    %v1520 = vsel %vm36, %v1516, 0.0
    %1521 = vadd.xlane.f32.xlu0 %v1520
    %v1522 = vpop.xlane.xlu0 %1521
    %v1523 = vmul.f32 %v1519, %v43
    %v1524 = vmul.f32 %v1522, %v43
    %v1525 = vadd.f32 %v1523, 1e-12
    %v1526 = vadd.f32 %v1524, 1e-12
    %v1527 = vrsqrt.pop %v1525
    %v1528 = vrsqrt.pop %v1526
    %v1529 = vmul.f32 %v1513, %v1527
    %v1530 = vmul.f32 %v1514, %v1528
    %v1531 = vlaneseq
    %v1532 = vshrl.u32 %v1531, 7
    %v1533 = vsub.s32 0, %v1532
    %v1534 = vrot.slane %v1503, %v1533
    %v1535 = vmul.f32 %v1529, %v1534
    %v1536 = vmul.f32 %v1530, %v1534
    %v1537 = vlaneseq
    %v1538 = vshrl.u32 %v1537, 7
    %v1539 = vsub.s32 0, %v1538
    %v1540 = vrot.slane %v1504, %v1539
    %v1541 = vadd.f32 %v1535, %v1540
    %v1542 = vadd.f32 %v1536, %v1540
    %v1543 = vld [vmem:[#allocation2 + $0x310] sm:$0xff]
    %v1544 = vld [vmem:[#allocation2 + $0x318] sm:$0xff]
    %v1545 = vld [vmem:[#allocation2 + $0x320] sm:$0xff]
    %v1546 = vld [vmem:[#allocation2 + $0x328] sm:$0xff]
    %v1547 = vpack.c.bf16 %v1544, %v1543
    %v1548 = vpack.c.bf16 %v1546, %v1545
    %v1549 = vpack.c.bf16 %v1542, %v1541
    %v1550 = vld [vmem:[#allocation2 + $0x330] sm:$0x1]
    %v1551 = vlaneseq
    %v1552 = vshrl.u32 %v1551, 7
    %v1553 = vsub.s32 0, %v1552
    %v1554 = vrot.slane %v1550, %v1553
    %v1556 = vsel %vm36, %v1549, 0
    %1558 = vmatprep.subr.bf16.mxu0 0
    %1559 = vmatpush1.bf16.msra.mxu0 0
    %1560 = vmatprep.subr.bf16.mxu0 0
    %1561 = vmatpush1.bf16.msra.mxu0 0
    %1562 = vmatprep.subr.bf16.mxu0 0
    %1563 = vmatpush1.bf16.msra.mxu0 0
    %1564 = vmatprep.subr.bf16.mxu0 0
    %1565 = vmatpush1.bf16.msra.mxu0 0
    %1566 = vmatprep.subr.bf16.mxu0 0
    %1567 = vmatpush1.bf16.msra.mxu0 0
    %1568 = vmatprep.subr.bf16.mxu0 0
    %1569 = vmatpush1.bf16.msra.mxu0 0
    %1570 = vmatprep.subr.bf16.mxu0 0
    %1571 = vmatpush1.bf16.msra.mxu0 %v1548
    %1572 = vmatprep.subr.bf16.mxu0 0
    %1573 = vmatpush1.bf16.msra.mxu0 %v1547
    %1574 = vmatprep.subr.bf16.mxu0 0
    %1575 = vmatpush2.bf16.msra.mxu0 0
    %1576 = vmatprep.subr.bf16.mxu0 0
    %1577 = vmatpush2.bf16.msra.mxu0 0
    %1578 = vmatprep.subr.bf16.mxu0 0
    %1579 = vmatpush2.bf16.msra.mxu0 0
    %1580 = vmatprep.subr.bf16.mxu0 0
    %1581 = vmatpush2.bf16.msra.mxu0 0
    %1582 = vmatprep.subr.bf16.mxu0 0
    %1583 = vmatpush2.bf16.msra.mxu0 0
    %1584 = vmatprep.subr.bf16.mxu0 0
    %1585 = vmatpush2.bf16.msra.mxu0 0
    %1586 = vmatprep.subr.bf16.mxu0 0
    %1587 = vmatpush2.bf16.msra.mxu0 0
    %1588 = vmatprep.subr.bf16.mxu0 0
    %1589 = vmatpush2.bf16.msra.mxu0 0
    %1590 = vmatprep.mubr.bf16.mxu0 0
    %1591 = vmatmul.mubr.bf16.gmra.mxu0 %v1556
    %v1592 = vpop.f32.mrf.mxu0
    %v1593 = vadd.f32 %v1554, %v1592
    %v1594 = vpop.f32.mrf.mxu0
    %v1595 = vpop.f32.mrf.mxu0
    %v1596 = vadd.f32 %v1554, %v1595
    %v1597 = vpop.f32.mrf.mxu0
    %1598 = vdwg.mxu0
    %v1599 = vmax.f32 %v1593, 0.0
    %v1600 = vmax.f32 %v1596, 0.0
    %v1601 = vld [vmem:[#allocation2 + $0x338] sm:$0xff]
    %v1602 = vld [vmem:[#allocation2 + $0x340] sm:$0xff]
    %v1603 = vld [vmem:[#allocation2 + $0x348] sm:$0xff]
    %v1604 = vld [vmem:[#allocation2 + $0x350] sm:$0xff]
    %v1605 = vld [vmem:[#allocation2 + $0x358] sm:$0xff]
    %v1606 = vld [vmem:[#allocation2 + $0x360] sm:$0xff]
    %v1607 = vld [vmem:[#allocation2 + $0x368] sm:$0xff]
    %v1608 = vld [vmem:[#allocation2 + $0x370] sm:$0xff]
    %v1609 = vpack.c.bf16 %v1602, %v1601
    %v1610 = vpack.c.bf16 %v1604, %v1603
    %v1611 = vpack.c.bf16 %v1606, %v1605
    %v1612 = vpack.c.bf16 %v1608, %v1607
    %v1613 = vpack.c.bf16 %v1600, %v1599
    %v1614 = vld [vmem:[#allocation2 + $0x378] sm:$0x1]
    %v1615 = vlaneseq
    %v1616 = vshrl.u32 %v1615, 7
    %v1617 = vsub.s32 0, %v1616
    %v1618 = vrot.slane %v1614, %v1617
    %vm1619 = vcmask 523264
    %v1621 = vsel %vm1619, %v1613, 0
    %1623 = vmatprep.subr.bf16.mxu0 0
    %1624 = vmatpush1.bf16.msra.mxu0 0
    %1625 = vmatprep.subr.bf16.mxu0 0
    %1626 = vmatpush1.bf16.msra.mxu0 0
    %1627 = vmatprep.subr.bf16.mxu0 0
    %1628 = vmatpush1.bf16.msra.mxu0 0
    %1629 = vmatprep.subr.bf16.mxu0 0
    %1630 = vmatpush1.bf16.msra.mxu0 0
    %1631 = vmatprep.subr.bf16.mxu0 0
    %1632 = vmatpush1.bf16.msra.mxu0 %v1612
    %1633 = vmatprep.subr.bf16.mxu0 0
    %1634 = vmatpush1.bf16.msra.mxu0 %v1611
    %1635 = vmatprep.subr.bf16.mxu0 0
    %1636 = vmatpush1.bf16.msra.mxu0 %v1610
    %1637 = vmatprep.subr.bf16.mxu0 0
    %1638 = vmatpush1.bf16.msra.mxu0 %v1609
    %1639 = vmatprep.subr.bf16.mxu0 0
    %1640 = vmatpush2.bf16.msra.mxu0 0
    %1641 = vmatprep.subr.bf16.mxu0 0
    %1642 = vmatpush2.bf16.msra.mxu0 0
    %1643 = vmatprep.subr.bf16.mxu0 0
    %1644 = vmatpush2.bf16.msra.mxu0 0
    %1645 = vmatprep.subr.bf16.mxu0 0
    %1646 = vmatpush2.bf16.msra.mxu0 0
    %1647 = vmatprep.subr.bf16.mxu0 0
    %1648 = vmatpush2.bf16.msra.mxu0 0
    %1649 = vmatprep.subr.bf16.mxu0 0
    %1650 = vmatpush2.bf16.msra.mxu0 0
    %1651 = vmatprep.subr.bf16.mxu0 0
    %1652 = vmatpush2.bf16.msra.mxu0 0
    %1653 = vmatprep.subr.bf16.mxu0 0
    %1654 = vmatpush2.bf16.msra.mxu0 0
    %1655 = vmatprep.mubr.bf16.mxu0 0
    %1656 = vmatmul.mubr.bf16.gmra.mxu0 %v1621
    %v1657 = vpop.f32.mrf.mxu0
    %v1658 = vadd.f32 %v1618, %v1657
    %v1659 = vpop.f32.mrf.mxu0
    %v1660 = vpop.f32.mrf.mxu0
    %v1661 = vadd.f32 %v1618, %v1660
    %v1662 = vpop.f32.mrf.mxu0
    %1663 = vdwg.mxu0
    %v1664 = vsub.f32 0.0, %v1658
    %v1665 = vsub.f32 0.0, %v1661
    %v1666 = vmul.f32 %v1664, 1.442695
    %v1667 = vpow.pop %v1666
    %v1668 = vmul.f32 %v1665, 1.442695
    %v1669 = vpow.pop %v1668
    %v1670 = vadd.f32 %v1667, 1.0
    %v1671 = vadd.f32 %v1669, 1.0
    %v1672 = vrcp.pop %v1670
    %v1673 = vmul.f32 1.0, %v1672
    %v1674 = vrcp.pop %v1671
    %v1675 = vmul.f32 1.0, %v1674
    %1676 = vst.msk [vmem:[%s2] sm:$0xff] %vm1619, %v1599
    %1677 = vst.msk [vmem:[%s2 + $0x8] sm:$0xff] %vm1619, %v1600
    %1680 = vrot.lane.b32.xlu0 %v1673, 64
    %v1681 = vpop.permute.xlu0 %1680
    %1682 = vrot.lane.b32.xlu0 %v1675, 64
    %v1683 = vpop.permute.xlu0 %1682
    %vm1686 = vcmask 1048064
    %1687 = vst.msk [vmem:[%s2] sm:$0xff] %vm1686, %v1681
    %1688 = vst.msk [vmem:[%s2 + $0x8] sm:$0xff] %vm1686, %v1683
    // Predicated region
    $region14: #{_lambda_.1} parent=1 // pred_check
      _
    $region15: #{_lambda_.1} parent=1 // pred_check_branch
      %1690 = sbr.rel (0) target = $region17
    $region16: #{_lambda_.1} parent=1 // pred_region
      _
    $region17: #{_lambda_.1} parent=1 // pred_fallthru
      _
    // Predicated region
    $region18: #{_lambda_.1} parent=1 // pred_check
      _
    $region19: #{_lambda_.1} parent=1 // pred_check_branch
      %1692 = sbr.rel (0) target = $region21
    $region20: #{_lambda_.1} parent=1 // pred_region
      _
    $region21: #{_lambda_.1} parent=1 // pred_fallthru
      _
    %1693 = vsyncpa [#allocation3], 1

</llo_original>
